<compile_context>
chip_gen: v5e
topology: v5e:2x2
jax: 0.10.0
libtpu: 0.0.40
codegen_flags: <defaults>
</compile_context>

<pallas_src>
import functools
import math

import jax
import jax.numpy as jnp
from jax import lax
from jax.experimental import pallas as pl
from jax.experimental.pallas import tpu as pltpu

NEG_BIG = -9.0e15  # plain Python float (never capture a jnp constant in-kernel)


# ----------------------------------------------------------------------------
# Fused Pallas kernel: gat1 (transfer=False, ELU) -> gat2 (transfer=True)
# for one batch tile of bt elements.
# ----------------------------------------------------------------------------
def _hgnn_att_kernel(alpha, n2_f, x_ref, adj_ref, vecs_ref, v32_ref, w_ref,
                     swc_ref, out_ref):
    x = x_ref[...].astype(jnp.float32)                   # (bt, N2, Din)
    adj_f = adj_ref[...].astype(jnp.float32)             # (bt, N1, N2) 0/1
    mask_e = adj_f                                       # multiplicative mask
    mask_n = jnp.swapaxes(adj_f, 1, 2)                   # (bt, N2, N1) (XLU)

    vecs = vecs_ref[...]                                 # (5, Din)
    v11, v21, v31 = vecs[0], vecs[1], vecs[2]            # layer-1 folded vecs
    v12, v22 = vecs[3], vecs[4]                          # layer-2 folded vecs
    v32 = v32_ref[...][0]                                # (out2,)
    w = w_ref[...]                                       # (Din, out2)
    swc1 = swc_ref[0]                                    # scalar (SMEM)
    swc2 = swc_ref[1]                                    # scalar (SMEM)

    def leaky(v):
        return jnp.where(v > 0, v, alpha * v)

    def elu(v):
        # TODO(synk): expm1 would be slightly more accurate for small negative v
        return jnp.where(v > 0, v, jnp.exp(v) - 1.0)

    def bmm(a, b):
        # (bt, M, K) @ (bt, K, N) -> (bt, M, N)
        return lax.dot_general(a, b, (((2,), (1,)), ((0,), (0,))),
                               preferred_element_type=jnp.float32)

    def edge_attention(feat, v1, swc, xt):
        # Scores depend only on node j -> shared-score softmax: exp over
        # (bt,N2) only, numerator = mask * p, uniform row for empty rows
        # (matches the dense reference's masked softmax).
        s = leaky(swc + jnp.sum(feat * v1, axis=-1))      # (bt, N2)
        p = jnp.exp(s - jnp.max(s, axis=-1, keepdims=True))
        num = mask_e * p[:, None, :]                      # (bt, N1, N2)
        denom = jnp.sum(num, axis=-1, keepdims=True)      # (bt, N1, 1)
        has = jnp.sum(mask_e, axis=-1, keepdims=True) > 0.0
        num = jnp.where(has, num, 1.0)
        denom = jnp.where(has, denom, n2_f)
        att = num * pl.reciprocal(denom, approx=True)     # (bt, N1, N2)
        return bmm(att, xt)                               # (bt, N1, Dt)

    def node_attention(feat, v2, edge, v3):
        s_q = jnp.sum(feat * v2, axis=-1)                 # (bt, N2)
        s_y = jnp.sum(edge * v3, axis=-1)                 # (bt, N1)
        e2t = leaky(s_q[:, :, None] + s_y[:, None, :])    # (bt, N2, N1)
        att = jnp.where(mask_n > 0.0, e2t, NEG_BIG)
        m = jnp.max(att, axis=-1, keepdims=True)
        pp = jnp.exp(att - m)
        dd = jnp.sum(pp, axis=-1, keepdims=True)
        att = pp * pl.reciprocal(dd, approx=True)         # (bt, N2, N1)
        return bmm(att, edge)                             # (bt, N2, Dt)

    # ---- layer 1: transfer=False (xt = x), concat=True (ELU) ---------------
    edge1 = edge_attention(x, v11, swc1, x)               # (bt, N1, Din)
    h = elu(node_attention(x, v21, edge1, v31))           # (bt, N2, Din)

    # ---- layer 2: transfer=True (xt = h @ W), concat=False ------------------
    bt, n2, d = h.shape
    xt2 = jnp.dot(h.reshape(bt * n2, d), w,
                  preferred_element_type=jnp.float32).reshape(bt, n2, -1)
    edge2 = edge_attention(h, v12, swc2, xt2)             # (bt, N1, out2)
    node2 = node_attention(h, v22, edge2, v32)            # (bt, N2, out2)
    out_ref[...] = node2.astype(out_ref.dtype)


# ----------------------------------------------------------------------------
# VMEM-budget helpers
# ----------------------------------------------------------------------------
def _vmem_capacity_bytes(default=64 * 1024 * 1024):
    try:
        info = pltpu.get_tpu_info()
        cap = getattr(info, "vmem_capacity_bytes", None)
        if cap:
            return int(cap)
    except Exception:
        pass
    return default


def _per_batch_vmem_bytes(N1, N2, Din, out2):
    dmax = max(Din, out2)
    io = 2 * (N2 * Din * 4        # x block (f32, double buffered)
              + N1 * N2 * 1       # adj block (int8, double buffered)
              + N2 * out2 * 4)    # output block (double buffered)
    inter = 4 * (4 * N1 * N2      # masks / att_e numerator
                 + 2 * N2 * N1    # scores / att_n
                 + 2 * N1 * dmax  # edge (both layers)
                 + 4 * N2 * dmax) # h, xt2, node2, temporaries
    return 2 * (io + inter)       # 2x fudge for compiler temps / spills


# ----------------------------------------------------------------------------
# Wrapper: parameter folding + single fused pallas_call
# ----------------------------------------------------------------------------
def hgnn_att_forward(x, H, p1, p2, *, alpha=0.2, batch_tile=None):
    B, N2, Din = x.shape
    N1 = H.shape[1]
    n_hid = p1["weight2"].shape[1]
    out2 = p2["weight2"].shape[1]
    # Structural constraint of the PyTorch module (gat1 has transfer=False, so
    # edge has Din columns and edge @ weight3 requires Din == n_hid).
    assert Din == n_hid, "gat1 requires input_size == n_hid"

    # Fold attention projection vectors into the weights (wrapper-side XLA).
    v11 = p1["weight2"] @ p1["a"][n_hid:, 0]              # (Din,)
    v21 = p1["weight2"] @ p1["a2"][:n_hid, 0]             # (Din,)
    v31 = p1["weight3"] @ p1["a2"][n_hid:, 0]             # (n_hid,)
    v12 = p2["weight2"] @ p2["a"][out2:, 0]               # (n_hid,)
    v22 = p2["weight2"] @ p2["a2"][:out2, 0]              # (n_hid,)
    vecs = jnp.stack([v11, v21, v31, v12, v22]).astype(jnp.float32)  # (5, Din)
    v32 = (p2["weight3"] @ p2["a2"][out2:, 0]).astype(jnp.float32)[None, :]
    w2 = p2["weight"].astype(jnp.float32)                 # (n_hid, out2)
    swc = jnp.stack([
        jnp.dot(p1["wc"][0], p1["a"][:n_hid, 0]),
        jnp.dot(p2["wc"][0], p2["a"][:out2, 0]),
    ]).astype(jnp.float32)                                # (2,) scalars -> SMEM

    # adj as int8 (4x less DMA); the transpose is done in-kernel (XLU).
    adj_e = (H > 0).astype(jnp.int8)                      # (B, N1, N2)

    # ---- generation-aware batch tile -----------------------------------------
    vmem_cap = _vmem_capacity_bytes()                     # 64 MiB fallback
    vmem_limit = min(max(int(vmem_cap * 3 // 4), 32 * 1024 * 1024),
                     112 * 1024 * 1024)
    per_b = _per_batch_vmem_bytes(N1, N2, Din, out2)
    cap = max(1, (vmem_limit * 3 // 4) // per_b)
    if batch_tile is None:
        # >=2 grid steps whenever B>=2 so both v7x TensorCores get work.
        batch_tile = max(1, min(int(cap), (B + 1) // 2 if B >= 2 else 1))
    bt = int(batch_tile)
    B_pad = ((B + bt - 1) // bt) * bt                     # pad, don't collapse

    x_f = x.astype(jnp.float32)
    if B_pad != B:
        x_f = jnp.pad(x_f, ((0, B_pad - B), (0, 0), (0, 0)))
        adj_e = jnp.pad(adj_e, ((0, B_pad - B), (0, 0), (0, 0)))
    grid = (B_pad // bt,)

    flops_per_b = (4 * N1 * N2 * Din + 2 * N2 * Din * out2 + 4 * N1 * N2 * out2
                   + 8 * N2 * Din + 4 * N1 * (Din + out2))
    cost = pl.CostEstimate(
        flops=int(B_pad * flops_per_b),
        transcendentals=int(B_pad * (2 * N2 + 2 * N2 * N1 + N2 * Din)),
        bytes_accessed=int(x_f.size * 4 + adj_e.size + B_pad * N2 * out2 * 4
                           + vecs.size * 4 + v32.size * 4 + w2.size * 4
                           + swc.size * 4),
    )

    kernel = functools.partial(_hgnn_att_kernel, float(alpha), float(N2))
    out = pl.pallas_call(
        kernel,
        out_shape=jax.ShapeDtypeStruct((B_pad, N2, out2), jnp.float32),
        grid=grid,
        in_specs=[
            pl.BlockSpec((bt, N2, Din), lambda b: (b, 0, 0)),
            pl.BlockSpec((bt, N1, N2), lambda b: (b, 0, 0)),
            pl.BlockSpec((5, Din), lambda b: (0, 0)),
            pl.BlockSpec((1, out2), lambda b: (0, 0)),
            pl.BlockSpec((Din, out2), lambda b: (0, 0)),
            pl.BlockSpec(memory_space=pltpu.MemorySpace.SMEM),
        ],
        out_specs=pl.BlockSpec((bt, N2, out2), lambda b: (b, 0, 0)),
        compiler_params=pltpu.CompilerParams(
            dimension_semantics=("parallel",),
            vmem_limit_bytes=int(vmem_limit)),
        cost_estimate=cost,
    )(x_f, adj_e, vecs, v32, w2, swc)
    return out[:B]


# ----------------------------------------------------------------------------
# Deterministic parameter init (mirrors reset_parameters: U(-stdv, stdv))
# ----------------------------------------------------------------------------
def init_layer_params(key, in_features, out_features, transfer):
    stdv = 1.0 / math.sqrt(out_features)
    ks = jax.random.split(key, 6)
    u = lambda k, shape: jax.random.uniform(k, shape, jnp.float32, -stdv, stdv)
    p = {
        "weight2": u(ks[0], (in_features, out_features)),
        "weight3": u(ks[1], (out_features, out_features)),
        "a": u(ks[2], (2 * out_features, 1)),
        "a2": u(ks[3], (2 * out_features, 1)),
        "wc": u(ks[4], (1, out_features)),   # word_context embedding (1, out)
    }
    if transfer:
        p["weight"] = u(ks[5], (in_features, out_features))
    return p


# ----------------------------------------------------------------------------
# Pure-JAX reference (dense equivalent of the PyTorch sparse code)
# ----------------------------------------------------------------------------
def ref_layer(x, adj, p, transfer, concat, alpha=0.2):
    Dout = p["weight2"].shape[1]
    lrelu = lambda v: jnp.where(v > 0, v, alpha * v)
    x4 = x @ p["weight2"]
    xt = x @ p["weight"] if transfer else x
    a1, a2, wc = p["a"], p["a2"], p["wc"]
    s1 = lrelu((wc @ a1[:Dout])[0, 0] + x4 @ a1[Dout:])          # (B, N2, 1)
    e1 = jnp.swapaxes(s1, 1, 2)                                   # (B, 1, N2)
    att1 = jax.nn.softmax(jnp.where(adj > 0, e1, NEG_BIG), axis=2)
    edge = att1 @ xt
    e4 = edge @ p["weight3"]
    s_q = x4 @ a2[:Dout]                                          # (B, N2, 1)
    s_y = e4 @ a2[Dout:]                                          # (B, N1, 1)
    e2 = lrelu(s_y + jnp.swapaxes(s_q, 1, 2))                     # (B, N1, N2)
    att2 = jax.nn.softmax(
        jnp.swapaxes(jnp.where(adj > 0, e2, NEG_BIG), 1, 2), axis=2)
    node = att2 @ edge
    if concat:
        node = jax.nn.elu(node)
    return node


def ref_forward(x, H, p1, p2):
    h = ref_layer(x, H, p1, transfer=False, concat=True)
    return ref_layer(h, H, p2, transfer=True, concat=False)


# ----------------------------------------------------------------------------
if __name__ == "__main__":
    key = jax.random.PRNGKey(0)
    B, N_edges, N_nodes = 2, 8, 16
    # gat1 has transfer=False, so the PyTorch module itself only works when
    # input_size == n_hid (edge @ weight3 shape constraint).
    input_size, n_hid, output_size = 32, 32, 16

    kx, kH, k1, k2 = jax.random.split(key, 4)
    x = jax.random.normal(kx, (B, N_nodes, input_size), jnp.float32)
    H = (jax.random.uniform(kH, (B, N_edges, N_nodes)) < 0.3).astype(jnp.float32)

    p1 = init_layer_params(k1, input_size, n_hid, transfer=False)
    p2 = init_layer_params(k2, n_hid, output_size, transfer=True)

    with jax.default_matmul_precision("float32"):
        out = jax.block_until_ready(hgnn_att_forward(x, H, p1, p2))
        ref = jax.block_until_ready(ref_forward(x, H, p1, p2))

    assert out.shape == (B, N_nodes, output_size)
    assert bool(jnp.all(jnp.isfinite(out)))
    assert bool(jnp.allclose(out, ref, atol=2e-2, rtol=2e-2)), (
        float(jnp.max(jnp.abs(out - ref))))
    print("KERNEL_OK")
</pallas_src>

<mosaic_0001>
module attributes {stable_mosaic.version = 11 : i64} {
  func.func @_hgnn_att_kernel(%arg0: i32, %arg1: memref<1x16x32xf32, #tpu.memory_space<vmem>>, %arg2: memref<1x8x16xi8, #tpu.memory_space<vmem>>, %arg3: memref<5x32xf32, #tpu.memory_space<vmem>>, %arg4: memref<1x16xf32, #tpu.memory_space<vmem>>, %arg5: memref<32x16xf32, #tpu.memory_space<vmem>>, %arg6: memref<2xf32, #tpu.memory_space<smem>>, %arg7: memref<1x16x16xf32, #tpu.memory_space<vmem>>) attributes {dimension_semantics = [#tpu.dimension_semantics<parallel>], iteration_bounds = array<i64: 2>, scalar_prefetch = 0 : i64, scratch_operands = 0 : i64, tpu.core_type = #tpu.core_type<tc>, window_params = [{transform_indices = @transform_0, window_bounds = array<i64: 1, 16, 32>}, {transform_indices = @transform_1, window_bounds = array<i64: 1, 8, 16>}, {pipeline_mode = #tpu.pipeline_mode<synchronous>, transform_indices = @transform_2, window_bounds = array<i64: 5, 32>}, {pipeline_mode = #tpu.pipeline_mode<synchronous>, transform_indices = @transform_3, window_bounds = array<i64: 1, 16>}, {pipeline_mode = #tpu.pipeline_mode<synchronous>, transform_indices = @transform_4, window_bounds = array<i64: 32, 16>}, {transform_indices = @transform_5, window_bounds = array<i64: 2>}, {transform_indices = @transform_6, window_bounds = array<i64: 1, 16, 16>}]} {
    %c0 = arith.constant 0 : index
    %c0_0 = arith.constant 0 : index
    %c0_1 = arith.constant 0 : index
    %0 = vector.load %arg1[%c0, %c0_0, %c0_1] : memref<1x16x32xf32, #tpu.memory_space<vmem>>, vector<1x16x32xf32>
    %c0_2 = arith.constant 0 : index
    %c0_3 = arith.constant 0 : index
    %c0_4 = arith.constant 0 : index
    %1 = vector.load %arg2[%c0_2, %c0_3, %c0_4] : memref<1x8x16xi8, #tpu.memory_space<vmem>>, vector<1x8x16xi8>
    %2 = arith.sitofp %1 : vector<1x8x16xi8> to vector<1x8x16xf32>
    %3 = tpu.transpose %2, [0, 2, 1] : vector<1x8x16xf32> -> vector<1x16x8xf32>
    %c0_5 = arith.constant 0 : index
    %c0_6 = arith.constant 0 : index
    %4 = vector.load %arg3[%c0_5, %c0_6] : memref<5x32xf32, #tpu.memory_space<vmem>>, vector<5x32xf32>
    %5 = vector.extract_strided_slice %4 {offsets = [0, 0], sizes = [1, 32], strides = [1, 1]} : vector<5x32xf32> to vector<1x32xf32>
    %6 = vector.shape_cast %5 : vector<1x32xf32> to vector<32xf32>
    %7 = vector.extract_strided_slice %4 {offsets = [1, 0], sizes = [1, 32], strides = [1, 1]} : vector<5x32xf32> to vector<1x32xf32>
    %8 = vector.shape_cast %7 : vector<1x32xf32> to vector<32xf32>
    %9 = vector.extract_strided_slice %4 {offsets = [2, 0], sizes = [1, 32], strides = [1, 1]} : vector<5x32xf32> to vector<1x32xf32>
    %10 = vector.shape_cast %9 : vector<1x32xf32> to vector<32xf32>
    %11 = vector.extract_strided_slice %4 {offsets = [3, 0], sizes = [1, 32], strides = [1, 1]} : vector<5x32xf32> to vector<1x32xf32>
    %12 = vector.shape_cast %11 : vector<1x32xf32> to vector<32xf32>
    %13 = vector.extract_strided_slice %4 {offsets = [4, 0], sizes = [1, 32], strides = [1, 1]} : vector<5x32xf32> to vector<1x32xf32>
    %14 = vector.shape_cast %13 : vector<1x32xf32> to vector<32xf32>
    %c0_7 = arith.constant 0 : index
    %c0_8 = arith.constant 0 : index
    %15 = vector.load %arg4[%c0_7, %c0_8] : memref<1x16xf32, #tpu.memory_space<vmem>>, vector<1x16xf32>
    %16 = vector.shape_cast %15 : vector<1x16xf32> to vector<16xf32>
    %c0_9 = arith.constant 0 : index
    %c0_10 = arith.constant 0 : index
    %17 = vector.load %arg5[%c0_9, %c0_10] : memref<32x16xf32, #tpu.memory_space<vmem>>, vector<32x16xf32>
    %c0_11 = arith.constant 0 : index
    %18 = memref.load %arg6[%c0_11] : memref<2xf32, #tpu.memory_space<smem>>
    %c1 = arith.constant 1 : index
    %19 = memref.load %arg6[%c1] : memref<2xf32, #tpu.memory_space<smem>>
    %20 = vector.shape_cast %6 : vector<32xf32> to vector<1x1x32xf32>
    %21 = vector.broadcast %20 : vector<1x1x32xf32> to vector<1x16x32xf32>
    %22 = arith.mulf %0, %21 : vector<1x16x32xf32>
    %cst = arith.constant dense<0.000000e+00> : vector<1x16xf32>
    %23 = vector.multi_reduction <add>, %22, %cst [2] : vector<1x16x32xf32> to vector<1x16xf32>
    %24 = vector.broadcast %18 : f32 to vector<1x16xf32>
    %25 = arith.addf %24, %23 : vector<1x16xf32>
    %cst_12 = arith.constant 0.000000e+00 : f32
    %26 = vector.broadcast %cst_12 : f32 to vector<1x16xf32>
    %27 = arith.cmpf ogt, %25, %26 : vector<1x16xf32>
    %cst_13 = arith.constant 2.000000e-01 : f32
    %28 = vector.broadcast %cst_13 : f32 to vector<1x16xf32>
    %29 = arith.mulf %28, %25 : vector<1x16xf32>
    %30 = arith.select %27, %25, %29 : vector<1x16xi1>, vector<1x16xf32>
    %cst_14 = arith.constant dense<0xFF800000> : vector<1xf32>
    %31 = vector.multi_reduction <maximumf>, %30, %cst_14 [1] : vector<1x16xf32> to vector<1xf32>
    %32 = vector.shape_cast %31 : vector<1xf32> to vector<1x1xf32>
    %33 = vector.broadcast %32 : vector<1x1xf32> to vector<1x16xf32>
    %34 = arith.subf %30, %33 : vector<1x16xf32>
    %35 = math.exp %34 : vector<1x16xf32>
    %36 = vector.shape_cast %35 : vector<1x16xf32> to vector<1x1x16xf32>
    %37 = vector.broadcast %36 : vector<1x1x16xf32> to vector<1x8x16xf32>
    %38 = arith.mulf %2, %37 : vector<1x8x16xf32>
    %cst_15 = arith.constant dense<0.000000e+00> : vector<1x8xf32>
    %39 = vector.multi_reduction <add>, %38, %cst_15 [2] : vector<1x8x16xf32> to vector<1x8xf32>
    %40 = vector.shape_cast %39 : vector<1x8xf32> to vector<1x8x1xf32>
    %cst_16 = arith.constant dense<0.000000e+00> : vector<1x8xf32>
    %41 = vector.multi_reduction <add>, %2, %cst_16 [2] : vector<1x8x16xf32> to vector<1x8xf32>
    %42 = vector.shape_cast %41 : vector<1x8xf32> to vector<1x8x1xf32>
    %cst_17 = arith.constant 0.000000e+00 : f32
    %43 = vector.broadcast %cst_17 : f32 to vector<1x8x1xf32>
    %44 = arith.cmpf ogt, %42, %43 : vector<1x8x1xf32>
    %cst_18 = arith.constant 1.000000e+00 : f32
    %45 = vector.shape_cast %44 : vector<1x8x1xi1> to vector<1x8x1xi1>
    %46 = vector.broadcast %45 : vector<1x8x1xi1> to vector<1x8x16xi1>
    %47 = vector.broadcast %cst_18 : f32 to vector<1x8x16xf32>
    %48 = arith.select %46, %38, %47 : vector<1x8x16xi1>, vector<1x8x16xf32>
    %cst_19 = arith.constant 1.600000e+01 : f32
    %49 = vector.broadcast %cst_19 : f32 to vector<1x8x1xf32>
    %50 = arith.select %44, %40, %49 : vector<1x8x1xi1>, vector<1x8x1xf32>
    %51 = tpu.reciprocal %50 {approx = true} : vector<1x8x1xf32> -> vector<1x8x1xf32>
    %52 = vector.broadcast %51 : vector<1x8x1xf32> to vector<1x8x16xf32>
    %53 = arith.mulf %48, %52 : vector<1x8x16xf32>
    %cst_20 = arith.constant dense<0.000000e+00> : vector<1x8x32xf32>
    %54 = tpu.matmul %53, %0, %cst_20 {dimension_numbers = #tpu.dot_dimension_numbers<[2], [1], [1], [2], [0, 0, 0, 1, 1, 2], [0], [0]>, precision = #tpu.contract_precision<fp32>} : vector<1x8x16xf32>, vector<1x16x32xf32>, vector<1x8x32xf32> -> vector<1x8x32xf32>
    %55 = vector.shape_cast %8 : vector<32xf32> to vector<1x1x32xf32>
    %56 = vector.broadcast %55 : vector<1x1x32xf32> to vector<1x16x32xf32>
    %57 = arith.mulf %0, %56 : vector<1x16x32xf32>
    %cst_21 = arith.constant dense<0.000000e+00> : vector<1x16xf32>
    %58 = vector.multi_reduction <add>, %57, %cst_21 [2] : vector<1x16x32xf32> to vector<1x16xf32>
    %59 = vector.shape_cast %10 : vector<32xf32> to vector<1x1x32xf32>
    %60 = vector.broadcast %59 : vector<1x1x32xf32> to vector<1x8x32xf32>
    %61 = arith.mulf %54, %60 : vector<1x8x32xf32>
    %cst_22 = arith.constant dense<0.000000e+00> : vector<1x8xf32>
    %62 = vector.multi_reduction <add>, %61, %cst_22 [2] : vector<1x8x32xf32> to vector<1x8xf32>
    %63 = vector.shape_cast %58 : vector<1x16xf32> to vector<1x16x1xf32>
    %64 = vector.shape_cast %62 : vector<1x8xf32> to vector<1x1x8xf32>
    %65 = vector.broadcast %63 : vector<1x16x1xf32> to vector<1x16x8xf32>
    %66 = vector.broadcast %64 : vector<1x1x8xf32> to vector<1x16x8xf32>
    %67 = arith.addf %65, %66 : vector<1x16x8xf32>
    %cst_23 = arith.constant 0.000000e+00 : f32
    %68 = vector.broadcast %cst_23 : f32 to vector<1x16x8xf32>
    %69 = arith.cmpf ogt, %67, %68 : vector<1x16x8xf32>
    %cst_24 = arith.constant 2.000000e-01 : f32
    %70 = vector.broadcast %cst_24 : f32 to vector<1x16x8xf32>
    %71 = arith.mulf %70, %67 : vector<1x16x8xf32>
    %72 = arith.select %69, %67, %71 : vector<1x16x8xi1>, vector<1x16x8xf32>
    %cst_25 = arith.constant 0.000000e+00 : f32
    %73 = vector.broadcast %cst_25 : f32 to vector<1x16x8xf32>
    %74 = arith.cmpf ogt, %3, %73 : vector<1x16x8xf32>
    %cst_26 = arith.constant -9.000000e+15 : f32
    %75 = vector.broadcast %cst_26 : f32 to vector<1x16x8xf32>
    %76 = arith.select %74, %72, %75 : vector<1x16x8xi1>, vector<1x16x8xf32>
    %cst_27 = arith.constant dense<0xFF800000> : vector<1x16xf32>
    %77 = vector.multi_reduction <maximumf>, %76, %cst_27 [2] : vector<1x16x8xf32> to vector<1x16xf32>
    %78 = vector.shape_cast %77 : vector<1x16xf32> to vector<1x16x1xf32>
    %79 = vector.broadcast %78 : vector<1x16x1xf32> to vector<1x16x8xf32>
    %80 = arith.subf %76, %79 : vector<1x16x8xf32>
    %81 = math.exp %80 : vector<1x16x8xf32>
    %cst_28 = arith.constant dense<0.000000e+00> : vector<1x16xf32>
    %82 = vector.multi_reduction <add>, %81, %cst_28 [2] : vector<1x16x8xf32> to vector<1x16xf32>
    %83 = vector.shape_cast %82 : vector<1x16xf32> to vector<1x16x1xf32>
    %84 = tpu.reciprocal %83 {approx = true} : vector<1x16x1xf32> -> vector<1x16x1xf32>
    %85 = vector.broadcast %84 : vector<1x16x1xf32> to vector<1x16x8xf32>
    %86 = arith.mulf %81, %85 : vector<1x16x8xf32>
    %cst_29 = arith.constant dense<0.000000e+00> : vector<1x16x32xf32>
    %87 = tpu.matmul %86, %54, %cst_29 {dimension_numbers = #tpu.dot_dimension_numbers<[2], [1], [1], [2], [0, 0, 0, 1, 1, 2], [0], [0]>, precision = #tpu.contract_precision<fp32>} : vector<1x16x8xf32>, vector<1x8x32xf32>, vector<1x16x32xf32> -> vector<1x16x32xf32>
    %cst_30 = arith.constant 0.000000e+00 : f32
    %88 = vector.broadcast %cst_30 : f32 to vector<1x16x32xf32>
    %89 = arith.cmpf ogt, %87, %88 : vector<1x16x32xf32>
    %90 = math.exp %87 : vector<1x16x32xf32>
    %cst_31 = arith.constant 1.000000e+00 : f32
    %91 = vector.broadcast %cst_31 : f32 to vector<1x16x32xf32>
    %92 = arith.subf %90, %91 : vector<1x16x32xf32>
    %93 = arith.select %89, %87, %92 : vector<1x16x32xi1>, vector<1x16x32xf32>
    %94 = vector.shape_cast %93 : vector<1x16x32xf32> to vector<16x32xf32>
    %cst_32 = arith.constant dense<0.000000e+00> : vector<16x16xf32>
    %95 = tpu.matmul %94, %17, %cst_32 {dimension_numbers = #tpu.dot_dimension_numbers<[1], [0], [0], [1], [0, 0, 1, 1], [], []>, precision = #tpu.contract_precision<fp32>} : vector<16x32xf32>, vector<32x16xf32>, vector<16x16xf32> -> vector<16x16xf32>
    %96 = vector.shape_cast %95 : vector<16x16xf32> to vector<1x16x16xf32>
    %97 = vector.shape_cast %12 : vector<32xf32> to vector<1x1x32xf32>
    %98 = vector.broadcast %97 : vector<1x1x32xf32> to vector<1x16x32xf32>
    %99 = arith.mulf %93, %98 : vector<1x16x32xf32>
    %cst_33 = arith.constant dense<0.000000e+00> : vector<1x16xf32>
    %100 = vector.multi_reduction <add>, %99, %cst_33 [2] : vector<1x16x32xf32> to vector<1x16xf32>
    %101 = vector.broadcast %19 : f32 to vector<1x16xf32>
    %102 = arith.addf %101, %100 : vector<1x16xf32>
    %cst_34 = arith.constant 0.000000e+00 : f32
    %103 = vector.broadcast %cst_34 : f32 to vector<1x16xf32>
    %104 = arith.cmpf ogt, %102, %103 : vector<1x16xf32>
    %cst_35 = arith.constant 2.000000e-01 : f32
    %105 = vector.broadcast %cst_35 : f32 to vector<1x16xf32>
    %106 = arith.mulf %105, %102 : vector<1x16xf32>
    %107 = arith.select %104, %102, %106 : vector<1x16xi1>, vector<1x16xf32>
    %cst_36 = arith.constant dense<0xFF800000> : vector<1xf32>
    %108 = vector.multi_reduction <maximumf>, %107, %cst_36 [1] : vector<1x16xf32> to vector<1xf32>
    %109 = vector.shape_cast %108 : vector<1xf32> to vector<1x1xf32>
    %110 = vector.broadcast %109 : vector<1x1xf32> to vector<1x16xf32>
    %111 = arith.subf %107, %110 : vector<1x16xf32>
    %112 = math.exp %111 : vector<1x16xf32>
    %113 = vector.shape_cast %112 : vector<1x16xf32> to vector<1x1x16xf32>
    %114 = vector.broadcast %113 : vector<1x1x16xf32> to vector<1x8x16xf32>
    %115 = arith.mulf %2, %114 : vector<1x8x16xf32>
    %cst_37 = arith.constant dense<0.000000e+00> : vector<1x8xf32>
    %116 = vector.multi_reduction <add>, %115, %cst_37 [2] : vector<1x8x16xf32> to vector<1x8xf32>
    %117 = vector.shape_cast %116 : vector<1x8xf32> to vector<1x8x1xf32>
    %cst_38 = arith.constant dense<0.000000e+00> : vector<1x8xf32>
    %118 = vector.multi_reduction <add>, %2, %cst_38 [2] : vector<1x8x16xf32> to vector<1x8xf32>
    %119 = vector.shape_cast %118 : vector<1x8xf32> to vector<1x8x1xf32>
    %cst_39 = arith.constant 0.000000e+00 : f32
    %120 = vector.broadcast %cst_39 : f32 to vector<1x8x1xf32>
    %121 = arith.cmpf ogt, %119, %120 : vector<1x8x1xf32>
    %cst_40 = arith.constant 1.000000e+00 : f32
    %122 = vector.shape_cast %121 : vector<1x8x1xi1> to vector<1x8x1xi1>
    %123 = vector.broadcast %122 : vector<1x8x1xi1> to vector<1x8x16xi1>
    %124 = vector.broadcast %cst_40 : f32 to vector<1x8x16xf32>
    %125 = arith.select %123, %115, %124 : vector<1x8x16xi1>, vector<1x8x16xf32>
    %cst_41 = arith.constant 1.600000e+01 : f32
    %126 = vector.broadcast %cst_41 : f32 to vector<1x8x1xf32>
    %127 = arith.select %121, %117, %126 : vector<1x8x1xi1>, vector<1x8x1xf32>
    %128 = tpu.reciprocal %127 {approx = true} : vector<1x8x1xf32> -> vector<1x8x1xf32>
    %129 = vector.broadcast %128 : vector<1x8x1xf32> to vector<1x8x16xf32>
    %130 = arith.mulf %125, %129 : vector<1x8x16xf32>
    %cst_42 = arith.constant dense<0.000000e+00> : vector<1x8x16xf32>
    %131 = tpu.matmul %130, %96, %cst_42 {dimension_numbers = #tpu.dot_dimension_numbers<[2], [1], [1], [2], [0, 0, 0, 1, 1, 2], [0], [0]>, precision = #tpu.contract_precision<fp32>} : vector<1x8x16xf32>, vector<1x16x16xf32>, vector<1x8x16xf32> -> vector<1x8x16xf32>
    %132 = vector.shape_cast %14 : vector<32xf32> to vector<1x1x32xf32>
    %133 = vector.broadcast %132 : vector<1x1x32xf32> to vector<1x16x32xf32>
    %134 = arith.mulf %93, %133 : vector<1x16x32xf32>
    %cst_43 = arith.constant dense<0.000000e+00> : vector<1x16xf32>
    %135 = vector.multi_reduction <add>, %134, %cst_43 [2] : vector<1x16x32xf32> to vector<1x16xf32>
    %136 = vector.shape_cast %16 : vector<16xf32> to vector<1x1x16xf32>
    %137 = vector.broadcast %136 : vector<1x1x16xf32> to vector<1x8x16xf32>
    %138 = arith.mulf %131, %137 : vector<1x8x16xf32>
    %cst_44 = arith.constant dense<0.000000e+00> : vector<1x8xf32>
    %139 = vector.multi_reduction <add>, %138, %cst_44 [2] : vector<1x8x16xf32> to vector<1x8xf32>
    %140 = vector.shape_cast %135 : vector<1x16xf32> to vector<1x16x1xf32>
    %141 = vector.shape_cast %139 : vector<1x8xf32> to vector<1x1x8xf32>
    %142 = vector.broadcast %140 : vector<1x16x1xf32> to vector<1x16x8xf32>
    %143 = vector.broadcast %141 : vector<1x1x8xf32> to vector<1x16x8xf32>
    %144 = arith.addf %142, %143 : vector<1x16x8xf32>
    %cst_45 = arith.constant 0.000000e+00 : f32
    %145 = vector.broadcast %cst_45 : f32 to vector<1x16x8xf32>
    %146 = arith.cmpf ogt, %144, %145 : vector<1x16x8xf32>
    %cst_46 = arith.constant 2.000000e-01 : f32
    %147 = vector.broadcast %cst_46 : f32 to vector<1x16x8xf32>
    %148 = arith.mulf %147, %144 : vector<1x16x8xf32>
    %149 = arith.select %146, %144, %148 : vector<1x16x8xi1>, vector<1x16x8xf32>
    %cst_47 = arith.constant 0.000000e+00 : f32
    %150 = vector.broadcast %cst_47 : f32 to vector<1x16x8xf32>
    %151 = arith.cmpf ogt, %3, %150 : vector<1x16x8xf32>
    %cst_48 = arith.constant -9.000000e+15 : f32
    %152 = vector.broadcast %cst_48 : f32 to vector<1x16x8xf32>
    %153 = arith.select %151, %149, %152 : vector<1x16x8xi1>, vector<1x16x8xf32>
    %cst_49 = arith.constant dense<0xFF800000> : vector<1x16xf32>
    %154 = vector.multi_reduction <maximumf>, %153, %cst_49 [2] : vector<1x16x8xf32> to vector<1x16xf32>
    %155 = vector.shape_cast %154 : vector<1x16xf32> to vector<1x16x1xf32>
    %156 = vector.broadcast %155 : vector<1x16x1xf32> to vector<1x16x8xf32>
    %157 = arith.subf %153, %156 : vector<1x16x8xf32>
    %158 = math.exp %157 : vector<1x16x8xf32>
    %cst_50 = arith.constant dense<0.000000e+00> : vector<1x16xf32>
    %159 = vector.multi_reduction <add>, %158, %cst_50 [2] : vector<1x16x8xf32> to vector<1x16xf32>
    %160 = vector.shape_cast %159 : vector<1x16xf32> to vector<1x16x1xf32>
    %161 = tpu.reciprocal %160 {approx = true} : vector<1x16x1xf32> -> vector<1x16x1xf32>
    %162 = vector.broadcast %161 : vector<1x16x1xf32> to vector<1x16x8xf32>
    %163 = arith.mulf %158, %162 : vector<1x16x8xf32>
    %cst_51 = arith.constant dense<0.000000e+00> : vector<1x16x16xf32>
    %164 = tpu.matmul %163, %131, %cst_51 {dimension_numbers = #tpu.dot_dimension_numbers<[2], [1], [1], [2], [0, 0, 0, 1, 1, 2], [0], [0]>, precision = #tpu.contract_precision<fp32>} : vector<1x16x8xf32>, vector<1x8x16xf32>, vector<1x16x16xf32> -> vector<1x16x16xf32>
    %c0_52 = arith.constant 0 : index
    %c0_53 = arith.constant 0 : index
    %c0_54 = arith.constant 0 : index
    %165 = vector.load %arg7[%c0_52, %c0_53, %c0_54] : memref<1x16x16xf32, #tpu.memory_space<vmem>>, vector<1x16x16xf32>
    tpu.vector_store %arg7[%c0_52, %c0_53, %c0_54], %164 {strides = array<i32>} : memref<1x16x16xf32, #tpu.memory_space<vmem>>, vector<1x16x16xf32>,
    return
  }
  func.func @transform_0(%arg0: i32) -> (i32, i32, i32) {
    %c0_i32 = arith.constant 0 : i32
    %c0_i32_0 = arith.constant 0 : i32
    %c0_i32_1 = arith.constant 0 : i32
    return %arg0, %c0_i32, %c0_i32_0 : i32, i32, i32
  }
  func.func @transform_1(%arg0: i32) -> (i32, i32, i32) {
    %c0_i32 = arith.constant 0 : i32
    %c0_i32_0 = arith.constant 0 : i32
    %c0_i32_1 = arith.constant 0 : i32
    return %arg0, %c0_i32, %c0_i32_0 : i32, i32, i32
  }
  func.func @transform_2(%arg0: i32) -> (i32, i32) {
    %c0_i32 = arith.constant 0 : i32
    %c0_i32_0 = arith.constant 0 : i32
    %c0_i32_1 = arith.constant 0 : i32
    return %c0_i32, %c0_i32_0 : i32, i32
  }
  func.func @transform_3(%arg0: i32) -> (i32, i32) {
    %c0_i32 = arith.constant 0 : i32
    %c0_i32_0 = arith.constant 0 : i32
    %c0_i32_1 = arith.constant 0 : i32
    return %c0_i32, %c0_i32_0 : i32, i32
  }
  func.func @transform_4(%arg0: i32) -> (i32, i32) {
    %c0_i32 = arith.constant 0 : i32
    %c0_i32_0 = arith.constant 0 : i32
    %c0_i32_1 = arith.constant 0 : i32
    return %c0_i32, %c0_i32_0 : i32, i32
  }
  func.func @transform_5(%arg0: i32) -> i32 {
    %c0_i32 = arith.constant 0 : i32
    %c0_i32_0 = arith.constant 0 : i32
    return %c0_i32 : i32
  }
  func.func @transform_6(%arg0: i32) -> (i32, i32, i32) {
    %c0_i32 = arith.constant 0 : i32
    %c0_i32_0 = arith.constant 0 : i32
    %c0_i32_1 = arith.constant 0 : i32
    return %arg0, %c0_i32, %c0_i32_0 : i32, i32, i32
  }
}

</mosaic_0001>

<llo_original>
// kernel: tpu_custom_call.1
$region0: #{tpu_custom_call.1}
  #allocation0 [shape = 'u32[]', space=smem, size = 0x4, offset = 0x4, fixed_abs, tag = 'smem constant byte address 0x4 - core index']
  #allocation1 [shape = 'u32[72,128]{1,0:T(1,128)}', space=vmem, size = 0x9000, scoped, tag = 'internal scratch']
  %s0 = inlined_call_operand.vmem [shape: f32[2,16,32], index: 0, kind: input, shape index: {}]
  %s1 = inlined_call_operand.vmem [shape: s8[2,8,16], index: 1, kind: input, shape index: {}]
  %s2 = inlined_call_operand.vmem [shape: f32[5,32], index: 2, kind: input, shape index: {}]
  %s3 = inlined_call_operand.vmem [shape: f32[1,16], index: 3, kind: input, shape index: {}]
  %s4 = inlined_call_operand.vmem [shape: f32[32,16], index: 4, kind: input, shape index: {}]
  %s5 = inlined_call_operand.vmem [shape: f32[2], index: 5, kind: input, shape index: {}]
  %s6 = inlined_call_operand.hbm [shape: f32[2,16,16], index: 6, kind: output, shape index: {}]
  %s7 = sld [smem:[#allocation0]]
  $region61: #{tpu_custom_call.1} parent=0
    _
  %s9 = ssub.s32 1, %s7
  %s10 = scalar_select 0, %s9, %s7
  $region1: #{tpu_custom_call.1} parent=0
    #allocation2 [shape = 'u8[512]{0}', space=smem, size = 0x200, scoped, tag = 'input window, operand 5, single buffered']
    #allocation3 [shape = 's32[2]{0}', space=sflag, size = 0x8, scoped, tag = 'scoped memory for tpu_custom_call.1']
    #allocation4 [shape = 's32[2]{0}', space=sflag, size = 0x8, scoped, tag = 'scoped memory for tpu_custom_call.1']
    #allocation5 [shape = 'u8[16384]{0}', space=vmem, size = 0x4000, scoped, tag = 'output window, operand 0']
    %11 = vsyncpa [#allocation4], 0
    %12 = vsyncpa [#allocation3], 0
    %s13 = scalar_lea.sflag [#allocation3], 1
    %14 = vsyncpa %s13, 0
    loop: start=0, step=1, limit=4
    $region2: #{tpu_custom_call.1} parent=1 // loop_pre_header
      _
    $region3: #{tpu_custom_call.1} parent=1 // loop_header
      %s16 = sphi 0, %s20
      %p17 = scmp.ge.s32.totalorder %s16, 4
      %s26 = sphi 0, %s28
      %s29 = sphi 0, %s26
      %s30 = sphi 0, %s29
      %s46 = sphi 0, %s30
      %s52 = sphi 0, %s54
      %s55 = sphi 0, %s52
      %s56 = sphi 0, %s55
      %s72 = sphi 0, %s56
      %s76 = sphi 0, %s76
      %s78 = sphi 0, %s76
      %s79 = sphi 0, %s78
      %s93 = sphi 0, %s79
      %s97 = sphi 0, %s97
      %s99 = sphi 0, %s97
      %s100 = sphi 0, %s99
      %s114 = sphi 0, %s100
      %s118 = sphi 0, %s118
      %s120 = sphi 0, %s118
      %s121 = sphi 0, %s120
      %s135 = sphi 0, %s121
      %s139 = sphi 0, %s139
      %s141 = sphi 0, %s139
      %s142 = sphi 0, %s141
      %s156 = sphi 0, %s142
      %s162 = sphi 0, %s164
      %s165 = sphi 0, %s162
      %s166 = sphi 0, %s165
      %s182 = sphi 0, %s166
    $region4: #{tpu_custom_call.1} parent=1 // loop_header_branch
      %19 = sbr.rel (%p17) target = $region8
    $region5: #{tpu_custom_call.1} parent=1 // loop_body
      %s21 = ssub.s32 %s16, 1
      %s22 = ssub.s32 %s16, 2
      %s23 = sadd.s32 %s16, 1
      %s24 = ssub.s32 %s16, %s23
      %p25 = scmp.eq.s32.totalorder %s24, 0
      %s27 = sadd.s32 %s26, 1
      %s28 = scalar_select %p25, %s26, %s27
      %p31 = pneg %p25
      %p32 = scmp.eq.s32.totalorder %s16, 1
      %p33 = por %p31, %p32
      %p34 = scmp.ne.s32.totalorder %s26, %s29
      %p35 = scmp.eq.s32.totalorder %s16, 0
      %p36 = por %p34, %p35
      %p37 = scmp.ne.s32.totalorder %s26, %s29
      %p38 = scmp.eq.s32.totalorder %s21, 1
      %p39 = por %p37, %p38
      %p40 = scmp.ne.s32.totalorder %s29, %s30
      %p41 = scmp.eq.s32.totalorder %s21, 0
      %p42 = por %p40, %p41
      %p43 = scmp.ne.s32.totalorder %s29, %s30
      %p44 = scmp.eq.s32.totalorder %s22, 1
      %p45 = por %p43, %p44
      %p47 = scmp.ne.s32.totalorder %s30, %s46
      %p48 = scmp.eq.s32.totalorder %s22, 0
      %p49 = por %p47, %p48
      %s50 = ssub.s32 %s16, %s23
      %p51 = scmp.eq.s32.totalorder %s50, 0
      %s53 = sadd.s32 %s52, 1
      %s54 = scalar_select %p51, %s52, %s53
      %p57 = pneg %p51
      %p58 = scmp.eq.s32.totalorder %s16, 1
      %p59 = por %p57, %p58
      %p60 = scmp.ne.s32.totalorder %s52, %s55
      %p61 = scmp.eq.s32.totalorder %s16, 0
      %p62 = por %p60, %p61
      %p63 = scmp.ne.s32.totalorder %s52, %s55
      %p64 = scmp.eq.s32.totalorder %s21, 1
      %p65 = por %p63, %p64
      %p66 = scmp.ne.s32.totalorder %s55, %s56
      %p67 = scmp.eq.s32.totalorder %s21, 0
      %p68 = por %p66, %p67
      %p69 = scmp.ne.s32.totalorder %s55, %s56
      %p70 = scmp.eq.s32.totalorder %s22, 1
      %p71 = por %p69, %p70
      %p73 = scmp.ne.s32.totalorder %s56, %s72
      %p74 = scmp.eq.s32.totalorder %s22, 0
      %p75 = por %p73, %p74
      %s77 = sadd.s32 %s76, 1
      %p80 = scmp.eq.s32.totalorder %s16, 1
      %p81 = scmp.ne.s32.totalorder %s76, %s78
      %p82 = scmp.eq.s32.totalorder %s16, 0
      %p83 = por %p81, %p82
      %p84 = scmp.ne.s32.totalorder %s76, %s78
      %p85 = scmp.eq.s32.totalorder %s21, 1
      %p86 = por %p84, %p85
      %p87 = scmp.ne.s32.totalorder %s78, %s79
      %p88 = scmp.eq.s32.totalorder %s21, 0
      %p89 = por %p87, %p88
      %p90 = scmp.ne.s32.totalorder %s78, %s79
      %p91 = scmp.eq.s32.totalorder %s22, 1
      %p92 = por %p90, %p91
      %p94 = scmp.ne.s32.totalorder %s79, %s93
      %p95 = scmp.eq.s32.totalorder %s22, 0
      %p96 = por %p94, %p95
      %s98 = sadd.s32 %s97, 1
      %p101 = scmp.eq.s32.totalorder %s16, 1
      %p102 = scmp.ne.s32.totalorder %s97, %s99
      %p103 = scmp.eq.s32.totalorder %s16, 0
      %p104 = por %p102, %p103
      %p105 = scmp.ne.s32.totalorder %s97, %s99
      %p106 = scmp.eq.s32.totalorder %s21, 1
      %p107 = por %p105, %p106
      %p108 = scmp.ne.s32.totalorder %s99, %s100
      %p109 = scmp.eq.s32.totalorder %s21, 0
      %p110 = por %p108, %p109
      %p111 = scmp.ne.s32.totalorder %s99, %s100
      %p112 = scmp.eq.s32.totalorder %s22, 1
      %p113 = por %p111, %p112
      %p115 = scmp.ne.s32.totalorder %s100, %s114
      %p116 = scmp.eq.s32.totalorder %s22, 0
      %p117 = por %p115, %p116
      %s119 = sadd.s32 %s118, 1
      %p122 = scmp.eq.s32.totalorder %s16, 1
      %p123 = scmp.ne.s32.totalorder %s118, %s120
      %p124 = scmp.eq.s32.totalorder %s16, 0
      %p125 = por %p123, %p124
      %p126 = scmp.ne.s32.totalorder %s118, %s120
      %p127 = scmp.eq.s32.totalorder %s21, 1
      %p128 = por %p126, %p127
      %p129 = scmp.ne.s32.totalorder %s120, %s121
      %p130 = scmp.eq.s32.totalorder %s21, 0
      %p131 = por %p129, %p130
      %p132 = scmp.ne.s32.totalorder %s120, %s121
      %p133 = scmp.eq.s32.totalorder %s22, 1
      %p134 = por %p132, %p133
      %p136 = scmp.ne.s32.totalorder %s121, %s135
      %p137 = scmp.eq.s32.totalorder %s22, 0
      %p138 = por %p136, %p137
      %s140 = sadd.s32 %s139, 1
      %p143 = scmp.eq.s32.totalorder %s16, 1
      %p144 = scmp.ne.s32.totalorder %s139, %s141
      %p145 = scmp.eq.s32.totalorder %s16, 0
      %p146 = por %p144, %p145
      %p147 = scmp.ne.s32.totalorder %s139, %s141
      %p148 = scmp.eq.s32.totalorder %s21, 1
      %p149 = por %p147, %p148
      %p150 = scmp.ne.s32.totalorder %s141, %s142
      %p151 = scmp.eq.s32.totalorder %s21, 0
      %p152 = por %p150, %p151
      %p153 = scmp.ne.s32.totalorder %s141, %s142
      %p154 = scmp.eq.s32.totalorder %s22, 1
      %p155 = por %p153, %p154
      %p157 = scmp.ne.s32.totalorder %s142, %s156
      %p158 = scmp.eq.s32.totalorder %s22, 0
      %p159 = por %p157, %p158
      %s160 = ssub.s32 %s16, %s23
      %p161 = scmp.eq.s32.totalorder %s160, 0
      %s163 = sadd.s32 %s162, 1
      %s164 = scalar_select %p161, %s162, %s163
      %p167 = pneg %p161
      %p168 = scmp.eq.s32.totalorder %s16, 1
      %p169 = por %p167, %p168
      %p170 = scmp.ne.s32.totalorder %s162, %s165
      %p171 = scmp.eq.s32.totalorder %s16, 0
      %p172 = por %p170, %p171
      %p173 = scmp.ne.s32.totalorder %s162, %s165
      %p174 = scmp.eq.s32.totalorder %s21, 1
      %p175 = por %p173, %p174
      %p176 = scmp.ne.s32.totalorder %s165, %s166
      %p177 = scmp.eq.s32.totalorder %s21, 0
      %p178 = por %p176, %p177
      %p179 = scmp.ne.s32.totalorder %s165, %s166
      %p180 = scmp.eq.s32.totalorder %s22, 1
      %p181 = por %p179, %p180
      %p183 = scmp.ne.s32.totalorder %s166, %s182
      %p184 = scmp.eq.s32.totalorder %s22, 0
      %p185 = por %p183, %p184
      %p186 = scmp.le.s32.totalorder 1, %s16
      %p187 = scmp.lt.s32.totalorder %s16, 3
      %p188 = pnand %p186, %p187
      %p189 = pneg %p188
      // Predicated region
      $region9: #{tpu_custom_call.1} parent=5 // pred_check
        _
      $region10: #{tpu_custom_call.1} parent=5 // pred_check_branch
        %191 = sbr.rel (%p188) target = $region12
      $region11: #{tpu_custom_call.1} parent=5 // pred_region
        %s192 = ssub.s32 %s16, 1
        // Predicated region
        $region13: #{tpu_custom_call.1} parent=11 // pred_check
          %p193 = pneg %p89
        $region14: #{tpu_custom_call.1} parent=11 // pred_check_branch
          %195 = sbr.rel (%p193) target = $region16
        $region15: #{tpu_custom_call.1} parent=11 // pred_region
          _
        $region16: #{tpu_custom_call.1} parent=11 // pred_fallthru
          _
        // Predicated region
        $region17: #{tpu_custom_call.1} parent=11 // pred_check
          %p196 = pneg %p110
        $region18: #{tpu_custom_call.1} parent=11 // pred_check_branch
          %198 = sbr.rel (%p196) target = $region20
        $region19: #{tpu_custom_call.1} parent=11 // pred_region
          _
        $region20: #{tpu_custom_call.1} parent=11 // pred_fallthru
          _
        // Predicated region
        $region21: #{tpu_custom_call.1} parent=11 // pred_check
          %p199 = pneg %p131
        $region22: #{tpu_custom_call.1} parent=11 // pred_check_branch
          %201 = sbr.rel (%p199) target = $region24
        $region23: #{tpu_custom_call.1} parent=11 // pred_region
          _
        $region24: #{tpu_custom_call.1} parent=11 // pred_fallthru
          _
        // Predicated region
        $region25: #{tpu_custom_call.1} parent=11 // pred_check
          %p202 = pneg %p152
        $region26: #{tpu_custom_call.1} parent=11 // pred_check_branch
          %204 = sbr.rel (%p202) target = $region28
        $region27: #{tpu_custom_call.1} parent=11 // pred_region
          %206 = vsyncadd [#allocation4], 0
          %s208 = sshll.u32 %s5, 4
          %s209 = int_to_ptr.vmem [resolvable:$true] %s208
          %211 = dma.vmem_to_smem %s209, 16, [#allocation2], [#allocation4]
        $region28: #{tpu_custom_call.1} parent=11 // pred_fallthru
          _
      $region12: #{tpu_custom_call.1} parent=5 // pred_fallthru
        _
      %p212 = scmp.lt.s32.totalorder %s16, 2
      // Predicated region
      $region29: #{tpu_custom_call.1} parent=5 // pred_check
        %p213 = pneg %p212
      $region30: #{tpu_custom_call.1} parent=5 // pred_check_branch
        %215 = sbr.rel (%p213) target = $region32
      $region31: #{tpu_custom_call.1} parent=5 // pred_region
        // Predicated region
        $region33: #{tpu_custom_call.1} parent=31 // pred_check
          %p216 = pneg %p36
        $region34: #{tpu_custom_call.1} parent=31 // pred_check_branch
          %218 = sbr.rel (%p216) target = $region36
        $region35: #{tpu_custom_call.1} parent=31 // pred_region
          %p219 = scmp.lt.s32.totalorder %s16, 1
          %s220 = scalar_select %p219, %s16, 1
          %s221 = smul.addr %s220, 2
          %s222 = smul.addr %s221, 8
          %s223 = scalar_lea.vmem %s0, %s222
        $region36: #{tpu_custom_call.1} parent=31 // pred_fallthru
          _
        // Predicated region
        $region37: #{tpu_custom_call.1} parent=31 // pred_check
          %p224 = pneg %p62
        $region38: #{tpu_custom_call.1} parent=31 // pred_check_branch
          %226 = sbr.rel (%p224) target = $region40
        $region39: #{tpu_custom_call.1} parent=31 // pred_region
          %p227 = scmp.lt.s32.totalorder %s16, 1
          %s228 = scalar_select %p227, %s16, 1
          %s229 = smul.addr %s228, 2
          %s230 = scalar_lea.vmem %s1, %s229
        $region40: #{tpu_custom_call.1} parent=31 // pred_fallthru
          _
      $region32: #{tpu_custom_call.1} parent=5 // pred_fallthru
        _
      %p231 = scmp.le.s32.totalorder 1, %s16
      %p232 = scmp.lt.s32.totalorder %s16, 3
      %p233 = pnand %p231, %p232
      %p234 = pneg %p233
      // Predicated region
      $region41: #{tpu_custom_call.1} parent=5 // pred_check
        _
      $region42: #{tpu_custom_call.1} parent=5 // pred_check_branch
        %236 = sbr.rel (%p233) target = $region44
      $region43: #{tpu_custom_call.1} parent=5 // pred_region
        %s237 = ssub.s32 %s16, 1
        // Predicated region
        $region45: #{tpu_custom_call.1} parent=43 // pred_check
          %p238 = pneg %p152
        $region46: #{tpu_custom_call.1} parent=43 // pred_check_branch
          %240 = sbr.rel (%p238) target = $region48
        $region47: #{tpu_custom_call.1} parent=43 // pred_region
          %242 = dma.done [#allocation4], 16
        $region48: #{tpu_custom_call.1} parent=43 // pred_fallthru
          _
        %243 = sfence
        %p244 = scmp.lt.s32.totalorder %s21, 1
        %s245 = scalar_select %p244, %s21, 1
        %s246 = smul.addr %s245, 2
        %s247 = smul.addr %s246, 8
        %s248 = scalar_lea.vmem %s0, %s247
        %p249 = pneg %p42
        %p250 = pneg %p39
        %p251 = scmp.lt.s32.totalorder %s21, 1
        %s252 = scalar_select %p251, %s21, 1
        %s253 = smul.addr %s252, 2
        %s254 = scalar_lea.vmem %s1, %s253
        %p255 = pneg %p68
        %p256 = pneg %p65
        %p257 = pneg %p89
        %p258 = pneg %p86
        %p259 = pneg %p110
        %p260 = pneg %p107
        %p261 = pneg %p131
        %p262 = pneg %p128
        %p263 = pneg %p152
        %p264 = pneg %p149
        %p265 = pneg %p178
        %p266 = pneg %p175
        %s267 = sand.u32 %s165, 1
        %s268 = scalar_lea.sflag [#allocation3], %s267
        %s269 = sand.u32 %s165, 1
        %s270 = smul.addr %s269, 16
        %s271 = scalar_lea.vmem [#allocation5], %s270
        %p272 = scmp.lt.s32.totalorder %s21, 1
        %s273 = scalar_select %p272, %s21, 1
        %s274 = smul.addr %s273, 2
        %s275 = smul.addr %s274, 8
        %s276 = scalar_lea.vmem %s0, %s275
        %p277 = scmp.lt.s32.totalorder %s21, 1
        %s278 = scalar_select %p277, %s21, 1
        %s279 = smul.addr %s278, 2
        %s280 = scalar_lea.vmem %s1, %s279
        %v281 = vld [vmem:[%s276] sm:$0xff]
        %v282 = vld [vmem:[%s276 + $0x8] sm:$0xff]
        %v283 = vld [vmem:[%s280] sm:$0x3]
        %v284 = vunpack.c.0.s8 %v283
        %v285 = vcvt.s32.f32 %v284
        %286 = vxpose.xlu0.b32.start [1/16] %v285, 128
        %287 = vxpose.xlu0.b32.cont [2/16] 0.0, 128
        %288 = vxpose.xlu0.b32.cont [3/16] 0.0, 128
        %289 = vxpose.xlu0.b32.cont [4/16] 0.0, 128
        %290 = vxpose.xlu0.b32.cont [5/16] 0.0, 128
        %291 = vxpose.xlu0.b32.cont [6/16] 0.0, 128
        %292 = vxpose.xlu0.b32.cont [7/16] 0.0, 128
        %293 = vxpose.xlu0.b32.cont [8/16] 0.0, 128
        %294 = vxpose.xlu0.b32.cont [9/16] 0.0, 128
        %295 = vxpose.xlu0.b32.cont [10/16] 0.0, 128
        %296 = vxpose.xlu0.b32.cont [11/16] 0.0, 128
        %297 = vxpose.xlu0.b32.cont [12/16] 0.0, 128
        %298 = vxpose.xlu0.b32.cont [13/16] 0.0, 128
        %299 = vxpose.xlu0.b32.cont [14/16] 0.0, 128
        %300 = vxpose.xlu0.b32.cont [15/16] 0.0, 128
        %301 = vxpose.xlu0.b32.end [16/16] 0.0, 128
        %v302 = vpop.trf.xlu0
        %v303 = vpop.trf.xlu0
        %v304 = vpop.trf.xlu0
        %v305 = vpop.trf.xlu0
        %v306 = vpop.trf.xlu0
        %v307 = vpop.trf.xlu0
        %v308 = vpop.trf.xlu0
        %v309 = vpop.trf.xlu0
        %v310 = vpop.trf.xlu0
        %v311 = vpop.trf.xlu0
        %v312 = vpop.trf.xlu0
        %v313 = vpop.trf.xlu0
        %v314 = vpop.trf.xlu0
        %v315 = vpop.trf.xlu0
        %v316 = vpop.trf.xlu0
        %v317 = vpop.trf.xlu0
        %v318 = vld [vmem:[%s2] sm:$0x1f]
        %v319 = vld [vmem:[%s3] sm:$0x1]
        %v320 = vld [vmem:[%s4] sm:$0xff]
        %v321 = vld [vmem:[%s4 + $0x8] sm:$0xff]
        %v322 = vld [vmem:[%s4 + $0x10] sm:$0xff]
        %v323 = vld [vmem:[%s4 + $0x18] sm:$0xff]
        %s324 = sld [smem:[#allocation2]]
        %s325 = sld [smem:[#allocation2 + $0x1]]
        %v326 = vperm.slane %v318, 0
        %v327 = vmul.f32 %v281, %v326
        %v328 = vmul.f32 %v282, %v326
        %vm329 = vcmask 261120
        %v330 = vsel %vm329, %v327, 0.0
        %331 = vadd.xlane.f32.xlu0 %v330
        %v332 = vpop.xlane.xlu0 %331
        %v333 = vsel %vm329, %v328, 0.0
        %334 = vadd.xlane.f32.xlu0 %v333
        %v335 = vpop.xlane.xlu0 %334
        %v336 = vstv %s324
        %v337 = vadd.f32 %v336, %v332
        %v338 = vadd.f32 %v336, %v335
        %vm339 = vcmp.gt.f32.partialorder %v337, 0.0
        %vm340 = vcmp.gt.f32.partialorder %v338, 0.0
        %v341 = vmul.f32 %v337, 0.2
        %v342 = vmul.f32 %v338, 0.2
        %v343 = vsel %vm339, %v337, %v341
        %v344 = vsel %vm340, %v338, %v342
        %v345 = vmax.f32 %v343, %v344
        %v346 = vrot.slane %v345, 4
        %v347 = vmax.f32 %v345, %v346
        %v348 = vrot.slane %v347, 2
        %v349 = vmax.f32 %v347, %v348
        %v350 = vrot.slane %v349, 1
        %v351 = vmax.f32 %v349, %v350
        %v352 = vsub.f32 %v343, %v351
        %v353 = vsub.f32 %v344, %v351
        %v354 = vmul.f32 %v352, 1.442695
        %v355 = vpow.pop %v354
        %v356 = vmul.f32 %v353, 1.442695
        %v357 = vpow.pop %v356
        %v360 = vlaneseq
        %v361 = vand.u32 %v360, 127
        %v362 = vperm.slane %v355, %v361
        %v363 = vadd.s32 %v361, 4294967288
        %v364 = vperm.slane %v357, %v363
        %vm365 = vcmask 130112
        %v366 = vsel %vm365, %v364, %v362
        %vm367 = vcmask 1042434
        %v368 = vsel %vm367, %v366, %v366
        %vm369 = vcmask 1043459
        %v370 = vsel %vm369, %v366, %v368
        %vm371 = vcmask 1044484
        %v372 = vsel %vm371, %v366, %v370
        %vm373 = vcmask 1045509
        %v374 = vsel %vm373, %v366, %v372
        %vm375 = vcmask 1046534
        %v376 = vsel %vm375, %v366, %v374
        %vm377 = vcmask 1047559
        %v378 = vsel %vm377, %v366, %v376
        %v380 = vmul.f32 %v285, %v378
        %vm381 = vcmask 130048
        %v382 = vsel %vm381, %v380, 0.0
        %383 = vadd.xlane.f32.xlu0 %v382
        %v384 = vpop.xlane.xlu0 %383
        %v385 = vsel %vm381, %v285, 0.0
        %386 = vadd.xlane.f32.xlu0 %v385
        %v387 = vpop.xlane.xlu0 %386
        %vm388 = vcmp.gt.f32.partialorder %v387, 0.0
        %v389 = vsel %vm388, 1, 0
        %vm390 = vcmp.eq.s32.totalorder %v389, 1
        %v391 = vsel %vm390, %v380, 1.0
        %v392 = vsel %vm388, %v384, 16.0
        %v393 = vrcp.pop %v392
        %v394 = vmul.f32 %v391, %v393
        %v396 = vsel %vm381, %v394, 0
        %398 = vmatpush.msra.mxu0 0.0
        %399 = vmatpush.msra.mxu0 0.0
        %400 = vmatpush.msra.mxu0 0.0
        %401 = vmatpush.msra.mxu0 0.0
        %402 = vmatpush.msra.mxu0 0.0
        %403 = vmatpush.msra.mxu0 0.0
        %404 = vmatpush.msra.mxu0 0.0
        %405 = vmatpush.msra.mxu0 0.0
        %406 = vmatpush.msra.mxu0 0.0
        %407 = vmatpush.msra.mxu0 0.0
        %408 = vmatpush.msra.mxu0 0.0
        %409 = vmatpush.msra.mxu0 0.0
        %410 = vmatpush.msra.mxu0 0.0
        %411 = vmatpush.msra.mxu0 0.0
        %v412 = vand.u32 %v282, 4294901760
        %413 = vmatpush.msra.mxu0 %v412
        %v414 = vand.u32 %v281, 4294901760
        %415 = vmatpush.msra.mxu0 %v414
        %v416 = vand.u32 %v396, 4294901760
        %v417 = vsub.f32 %v396, %v416
        %v418 = vand.u32 %v417, 4294901760
        %v419 = vsub.f32 %v417, %v418
        %v420 = vand.u32 %v419, 4294901760
        %421 = vmatmul.f32.gmra.mxu0 %v420
        %v422 = vpop.f32.mrf.mxu0
        %v423 = vadd.f32 0.0, %v422
        %424 = vdwg.mxu0
        %425 = vmatpush.msra.mxu0 0.0
        %426 = vmatpush.msra.mxu0 0.0
        %427 = vmatpush.msra.mxu0 0.0
        %428 = vmatpush.msra.mxu0 0.0
        %429 = vmatpush.msra.mxu0 0.0
        %430 = vmatpush.msra.mxu0 0.0
        %431 = vmatpush.msra.mxu0 0.0
        %432 = vmatpush.msra.mxu0 0.0
        %433 = vmatpush.msra.mxu0 0.0
        %434 = vmatpush.msra.mxu0 0.0
        %435 = vmatpush.msra.mxu0 0.0
        %436 = vmatpush.msra.mxu0 0.0
        %437 = vmatpush.msra.mxu0 0.0
        %438 = vmatpush.msra.mxu0 0.0
        %v439 = vand.u32 %v282, 4294901760
        %v440 = vsub.f32 %v282, %v439
        %v441 = vand.u32 %v440, 4294901760
        %v442 = vsub.f32 %v440, %v441
        %v443 = vand.u32 %v442, 4294901760
        %444 = vmatpush.msra.mxu0 %v443
        %v445 = vand.u32 %v281, 4294901760
        %v446 = vsub.f32 %v281, %v445
        %v447 = vand.u32 %v446, 4294901760
        %v448 = vsub.f32 %v446, %v447
        %v449 = vand.u32 %v448, 4294901760
        %450 = vmatpush.msra.mxu0 %v449
        %v451 = vand.u32 %v396, 4294901760
        %452 = vmatmul.f32.gmra.mxu0 %v451
        %v453 = vpop.f32.mrf.mxu0
        %v454 = vadd.f32 %v423, %v453
        %455 = vdwg.mxu0
        %456 = vmatpush.msra.mxu0 0.0
        %457 = vmatpush.msra.mxu0 0.0
        %458 = vmatpush.msra.mxu0 0.0
        %459 = vmatpush.msra.mxu0 0.0
        %460 = vmatpush.msra.mxu0 0.0
        %461 = vmatpush.msra.mxu0 0.0
        %462 = vmatpush.msra.mxu0 0.0
        %463 = vmatpush.msra.mxu0 0.0
        %464 = vmatpush.msra.mxu0 0.0
        %465 = vmatpush.msra.mxu0 0.0
        %466 = vmatpush.msra.mxu0 0.0
        %467 = vmatpush.msra.mxu0 0.0
        %468 = vmatpush.msra.mxu0 0.0
        %469 = vmatpush.msra.mxu0 0.0
        %v470 = vand.u32 %v282, 4294901760
        %v471 = vsub.f32 %v282, %v470
        %472 = vmatpush.msra.mxu0 %v471
        %v473 = vand.u32 %v281, 4294901760
        %v474 = vsub.f32 %v281, %v473
        %475 = vmatpush.msra.mxu0 %v474
        %v476 = vand.u32 %v396, 4294901760
        %v477 = vsub.f32 %v396, %v476
        %478 = vmatmul.f32.gmra.mxu0 %v477
        %v479 = vpop.f32.mrf.mxu0
        %v480 = vadd.f32 %v454, %v479
        %481 = vdwg.mxu0
        %482 = vmatpush.msra.mxu0 0.0
        %483 = vmatpush.msra.mxu0 0.0
        %484 = vmatpush.msra.mxu0 0.0
        %485 = vmatpush.msra.mxu0 0.0
        %486 = vmatpush.msra.mxu0 0.0
        %487 = vmatpush.msra.mxu0 0.0
        %488 = vmatpush.msra.mxu0 0.0
        %489 = vmatpush.msra.mxu0 0.0
        %490 = vmatpush.msra.mxu0 0.0
        %491 = vmatpush.msra.mxu0 0.0
        %492 = vmatpush.msra.mxu0 0.0
        %493 = vmatpush.msra.mxu0 0.0
        %494 = vmatpush.msra.mxu0 0.0
        %495 = vmatpush.msra.mxu0 0.0
        %v496 = vand.u32 %v282, 4294901760
        %497 = vmatpush.msra.mxu0 %v496
        %v498 = vand.u32 %v281, 4294901760
        %499 = vmatpush.msra.mxu0 %v498
        %v500 = vand.u32 %v396, 4294901760
        %v501 = vsub.f32 %v396, %v500
        %v502 = vand.u32 %v501, 4294901760
        %503 = vmatmul.f32.gmra.mxu0 %v502
        %v504 = vpop.f32.mrf.mxu0
        %v505 = vadd.f32 %v480, %v504
        %506 = vdwg.mxu0
        %507 = vmatpush.msra.mxu0 0.0
        %508 = vmatpush.msra.mxu0 0.0
        %509 = vmatpush.msra.mxu0 0.0
        %510 = vmatpush.msra.mxu0 0.0
        %511 = vmatpush.msra.mxu0 0.0
        %512 = vmatpush.msra.mxu0 0.0
        %513 = vmatpush.msra.mxu0 0.0
        %514 = vmatpush.msra.mxu0 0.0
        %515 = vmatpush.msra.mxu0 0.0
        %516 = vmatpush.msra.mxu0 0.0
        %517 = vmatpush.msra.mxu0 0.0
        %518 = vmatpush.msra.mxu0 0.0
        %519 = vmatpush.msra.mxu0 0.0
        %520 = vmatpush.msra.mxu0 0.0
        %v521 = vand.u32 %v282, 4294901760
        %v522 = vsub.f32 %v282, %v521
        %v523 = vand.u32 %v522, 4294901760
        %524 = vmatpush.msra.mxu0 %v523
        %v525 = vand.u32 %v281, 4294901760
        %v526 = vsub.f32 %v281, %v525
        %v527 = vand.u32 %v526, 4294901760
        %528 = vmatpush.msra.mxu0 %v527
        %v529 = vand.u32 %v396, 4294901760
        %530 = vmatmul.f32.gmra.mxu0 %v529
        %v531 = vpop.f32.mrf.mxu0
        %v532 = vadd.f32 %v505, %v531
        %533 = vdwg.mxu0
        %534 = vmatpush.msra.mxu0 0.0
        %535 = vmatpush.msra.mxu0 0.0
        %536 = vmatpush.msra.mxu0 0.0
        %537 = vmatpush.msra.mxu0 0.0
        %538 = vmatpush.msra.mxu0 0.0
        %539 = vmatpush.msra.mxu0 0.0
        %540 = vmatpush.msra.mxu0 0.0
        %541 = vmatpush.msra.mxu0 0.0
        %542 = vmatpush.msra.mxu0 0.0
        %543 = vmatpush.msra.mxu0 0.0
        %544 = vmatpush.msra.mxu0 0.0
        %545 = vmatpush.msra.mxu0 0.0
        %546 = vmatpush.msra.mxu0 0.0
        %547 = vmatpush.msra.mxu0 0.0
        %v548 = vand.u32 %v282, 4294901760
        %549 = vmatpush.msra.mxu0 %v548
        %v550 = vand.u32 %v281, 4294901760
        %551 = vmatpush.msra.mxu0 %v550
        %v552 = vand.u32 %v396, 4294901760
        %553 = vmatmul.f32.gmra.mxu0 %v552
        %v554 = vpop.f32.mrf.mxu0
        %v555 = vadd.f32 %v532, %v554
        %556 = vdwg.mxu0
        %v557 = vperm.slane %v318, 1
        %v558 = vmul.f32 %v281, %v557
        %v559 = vmul.f32 %v282, %v557
        %v560 = vsel %vm329, %v558, 0.0
        %561 = vadd.xlane.f32.xlu0 %v560
        %v562 = vpop.xlane.xlu0 %561
        %v563 = vsel %vm329, %v559, 0.0
        %564 = vadd.xlane.f32.xlu0 %v563
        %v565 = vpop.xlane.xlu0 %564
        %v566 = vperm.slane %v318, 2
        %v567 = vmul.f32 %v555, %v566
        %v568 = vsel %vm329, %v567, 0.0
        %569 = vadd.xlane.f32.xlu0 %v568
        %v570 = vpop.xlane.xlu0 %569
        %v572 = vperm.slane %v570, %v361
        %v573 = vsel %vm367, %v572, %v572
        %v574 = vsel %vm369, %v572, %v573
        %v575 = vsel %vm371, %v572, %v574
        %v576 = vsel %vm373, %v572, %v575
        %v577 = vsel %vm375, %v572, %v576
        %v578 = vsel %vm377, %v572, %v577
        %v580 = vadd.f32 %v562, %v578
        %v581 = vadd.f32 %v565, %v578
        %vm582 = vcmp.gt.f32.partialorder %v580, 0.0
        %vm583 = vcmp.gt.f32.partialorder %v581, 0.0
        %v584 = vmul.f32 %v580, 0.2
        %v585 = vmul.f32 %v581, 0.2
        %v586 = vsel %vm582, %v580, %v584
        %v587 = vsel %vm583, %v581, %v585
        %vm588 = vcmp.gt.f32.partialorder %v302, 0.0
        %vm589 = vcmp.gt.f32.partialorder %v303, 0.0
        %v590 = vsel %vm588, %v586, -9e+15
        %v591 = vsel %vm589, %v587, -9e+15
        %vm592 = vcmask 64512
        %v593 = vsel %vm592, %v590, -inf
        %594 = vmax.xlane.f32.xlu0 %v593
        %v595 = vpop.xlane.xlu0 %594
        %v596 = vsel %vm592, %v591, -inf
        %597 = vmax.xlane.f32.xlu0 %v596
        %v598 = vpop.xlane.xlu0 %597
        %v599 = vsub.f32 %v590, %v595
        %v600 = vsub.f32 %v591, %v598
        %v601 = vmul.f32 %v599, 1.442695
        %v602 = vpow.pop %v601
        %v603 = vmul.f32 %v600, 1.442695
        %v604 = vpow.pop %v603
        %v605 = vsel %vm592, %v602, 0.0
        %606 = vadd.xlane.f32.xlu0 %v605
        %v607 = vpop.xlane.xlu0 %606
        %v608 = vsel %vm592, %v604, 0.0
        %609 = vadd.xlane.f32.xlu0 %v608
        %v610 = vpop.xlane.xlu0 %609
        %v611 = vrcp.pop %v607
        %v612 = vrcp.pop %v610
        %v613 = vmul.f32 %v602, %v611
        %v614 = vmul.f32 %v604, %v612
        %v616 = vsel %vm592, %v613, 0
        %v619 = vsel %vm592, %v614, 0
        %621 = vmatpush.msra.mxu0 0.0
        %622 = vmatpush.msra.mxu0 0.0
        %623 = vmatpush.msra.mxu0 0.0
        %624 = vmatpush.msra.mxu0 0.0
        %625 = vmatpush.msra.mxu0 0.0
        %626 = vmatpush.msra.mxu0 0.0
        %627 = vmatpush.msra.mxu0 0.0
        %628 = vmatpush.msra.mxu0 0.0
        %629 = vmatpush.msra.mxu0 0.0
        %630 = vmatpush.msra.mxu0 0.0
        %631 = vmatpush.msra.mxu0 0.0
        %632 = vmatpush.msra.mxu0 0.0
        %633 = vmatpush.msra.mxu0 0.0
        %634 = vmatpush.msra.mxu0 0.0
        %635 = vmatpush.msra.mxu0 0.0
        %v636 = vand.u32 %v555, 4294901760
        %637 = vmatpush.msra.mxu0 %v636
        %v638 = vand.u32 %v616, 4294901760
        %v639 = vsub.f32 %v616, %v638
        %v640 = vand.u32 %v639, 4294901760
        %v641 = vsub.f32 %v639, %v640
        %v642 = vand.u32 %v641, 4294901760
        %643 = vmatmul.f32.gmra.mxu0 %v642
        %v644 = vpop.f32.mrf.mxu0
        %v645 = vadd.f32 0.0, %v644
        %v646 = vand.u32 %v619, 4294901760
        %v647 = vsub.f32 %v619, %v646
        %v648 = vand.u32 %v647, 4294901760
        %v649 = vsub.f32 %v647, %v648
        %v650 = vand.u32 %v649, 4294901760
        %651 = vmatmul.f32.gmra.mxu0 %v650
        %v652 = vpop.f32.mrf.mxu0
        %v653 = vadd.f32 0.0, %v652
        %654 = vdwg.mxu0
        %655 = vmatpush.msra.mxu0 0.0
        %656 = vmatpush.msra.mxu0 0.0
        %657 = vmatpush.msra.mxu0 0.0
        %658 = vmatpush.msra.mxu0 0.0
        %659 = vmatpush.msra.mxu0 0.0
        %660 = vmatpush.msra.mxu0 0.0
        %661 = vmatpush.msra.mxu0 0.0
        %662 = vmatpush.msra.mxu0 0.0
        %663 = vmatpush.msra.mxu0 0.0
        %664 = vmatpush.msra.mxu0 0.0
        %665 = vmatpush.msra.mxu0 0.0
        %666 = vmatpush.msra.mxu0 0.0
        %667 = vmatpush.msra.mxu0 0.0
        %668 = vmatpush.msra.mxu0 0.0
        %669 = vmatpush.msra.mxu0 0.0
        %v670 = vand.u32 %v555, 4294901760
        %v671 = vsub.f32 %v555, %v670
        %v672 = vand.u32 %v671, 4294901760
        %v673 = vsub.f32 %v671, %v672
        %v674 = vand.u32 %v673, 4294901760
        %675 = vmatpush.msra.mxu0 %v674
        %v676 = vand.u32 %v616, 4294901760
        %677 = vmatmul.f32.gmra.mxu0 %v676
        %v678 = vpop.f32.mrf.mxu0
        %v679 = vadd.f32 %v645, %v678
        %v680 = vand.u32 %v619, 4294901760
        %681 = vmatmul.f32.gmra.mxu0 %v680
        %v682 = vpop.f32.mrf.mxu0
        %v683 = vadd.f32 %v653, %v682
        %684 = vdwg.mxu0
        %685 = vmatpush.msra.mxu0 0.0
        %686 = vmatpush.msra.mxu0 0.0
        %687 = vmatpush.msra.mxu0 0.0
        %688 = vmatpush.msra.mxu0 0.0
        %689 = vmatpush.msra.mxu0 0.0
        %690 = vmatpush.msra.mxu0 0.0
        %691 = vmatpush.msra.mxu0 0.0
        %692 = vmatpush.msra.mxu0 0.0
        %693 = vmatpush.msra.mxu0 0.0
        %694 = vmatpush.msra.mxu0 0.0
        %695 = vmatpush.msra.mxu0 0.0
        %696 = vmatpush.msra.mxu0 0.0
        %697 = vmatpush.msra.mxu0 0.0
        %698 = vmatpush.msra.mxu0 0.0
        %699 = vmatpush.msra.mxu0 0.0
        %v700 = vand.u32 %v555, 4294901760
        %v701 = vsub.f32 %v555, %v700
        %702 = vmatpush.msra.mxu0 %v701
        %v703 = vand.u32 %v616, 4294901760
        %v704 = vsub.f32 %v616, %v703
        %705 = vmatmul.f32.gmra.mxu0 %v704
        %v706 = vpop.f32.mrf.mxu0
        %v707 = vadd.f32 %v679, %v706
        %v708 = vand.u32 %v619, 4294901760
        %v709 = vsub.f32 %v619, %v708
        %710 = vmatmul.f32.gmra.mxu0 %v709
        %v711 = vpop.f32.mrf.mxu0
        %v712 = vadd.f32 %v683, %v711
        %713 = vdwg.mxu0
        %714 = vmatpush.msra.mxu0 0.0
        %715 = vmatpush.msra.mxu0 0.0
        %716 = vmatpush.msra.mxu0 0.0
        %717 = vmatpush.msra.mxu0 0.0
        %718 = vmatpush.msra.mxu0 0.0
        %719 = vmatpush.msra.mxu0 0.0
        %720 = vmatpush.msra.mxu0 0.0
        %721 = vmatpush.msra.mxu0 0.0
        %722 = vmatpush.msra.mxu0 0.0
        %723 = vmatpush.msra.mxu0 0.0
        %724 = vmatpush.msra.mxu0 0.0
        %725 = vmatpush.msra.mxu0 0.0
        %726 = vmatpush.msra.mxu0 0.0
        %727 = vmatpush.msra.mxu0 0.0
        %728 = vmatpush.msra.mxu0 0.0
        %v729 = vand.u32 %v555, 4294901760
        %730 = vmatpush.msra.mxu0 %v729
        %v731 = vand.u32 %v616, 4294901760
        %v732 = vsub.f32 %v616, %v731
        %v733 = vand.u32 %v732, 4294901760
        %734 = vmatmul.f32.gmra.mxu0 %v733
        %v735 = vpop.f32.mrf.mxu0
        %v736 = vadd.f32 %v707, %v735
        %v737 = vand.u32 %v619, 4294901760
        %v738 = vsub.f32 %v619, %v737
        %v739 = vand.u32 %v738, 4294901760
        %740 = vmatmul.f32.gmra.mxu0 %v739
        %v741 = vpop.f32.mrf.mxu0
        %v742 = vadd.f32 %v712, %v741
        %743 = vdwg.mxu0
        %744 = vmatpush.msra.mxu0 0.0
        %745 = vmatpush.msra.mxu0 0.0
        %746 = vmatpush.msra.mxu0 0.0
        %747 = vmatpush.msra.mxu0 0.0
        %748 = vmatpush.msra.mxu0 0.0
        %749 = vmatpush.msra.mxu0 0.0
        %750 = vmatpush.msra.mxu0 0.0
        %751 = vmatpush.msra.mxu0 0.0
        %752 = vmatpush.msra.mxu0 0.0
        %753 = vmatpush.msra.mxu0 0.0
        %754 = vmatpush.msra.mxu0 0.0
        %755 = vmatpush.msra.mxu0 0.0
        %756 = vmatpush.msra.mxu0 0.0
        %757 = vmatpush.msra.mxu0 0.0
        %758 = vmatpush.msra.mxu0 0.0
        %v759 = vand.u32 %v555, 4294901760
        %v760 = vsub.f32 %v555, %v759
        %v761 = vand.u32 %v760, 4294901760
        %762 = vmatpush.msra.mxu0 %v761
        %v763 = vand.u32 %v616, 4294901760
        %764 = vmatmul.f32.gmra.mxu0 %v763
        %v765 = vpop.f32.mrf.mxu0
        %v766 = vadd.f32 %v736, %v765
        %v767 = vand.u32 %v619, 4294901760
        %768 = vmatmul.f32.gmra.mxu0 %v767
        %v769 = vpop.f32.mrf.mxu0
        %v770 = vadd.f32 %v742, %v769
        %771 = vdwg.mxu0
        %772 = vmatpush.msra.mxu0 0.0
        %773 = vmatpush.msra.mxu0 0.0
        %774 = vmatpush.msra.mxu0 0.0
        %775 = vmatpush.msra.mxu0 0.0
        %776 = vmatpush.msra.mxu0 0.0
        %777 = vmatpush.msra.mxu0 0.0
        %778 = vmatpush.msra.mxu0 0.0
        %779 = vmatpush.msra.mxu0 0.0
        %780 = vmatpush.msra.mxu0 0.0
        %781 = vmatpush.msra.mxu0 0.0
        %782 = vmatpush.msra.mxu0 0.0
        %783 = vmatpush.msra.mxu0 0.0
        %784 = vmatpush.msra.mxu0 0.0
        %785 = vmatpush.msra.mxu0 0.0
        %786 = vmatpush.msra.mxu0 0.0
        %v787 = vand.u32 %v555, 4294901760
        %788 = vmatpush.msra.mxu0 %v787
        %v789 = vand.u32 %v616, 4294901760
        %790 = vmatmul.f32.gmra.mxu0 %v789
        %v791 = vpop.f32.mrf.mxu0
        %v792 = vadd.f32 %v766, %v791
        %v793 = vand.u32 %v619, 4294901760
        %794 = vmatmul.f32.gmra.mxu0 %v793
        %v795 = vpop.f32.mrf.mxu0
        %v796 = vadd.f32 %v770, %v795
        %797 = vdwg.mxu0
        %vm798 = vcmp.gt.f32.partialorder %v792, 0.0
        %vm799 = vcmp.gt.f32.partialorder %v796, 0.0
        %v800 = vmul.f32 %v792, 1.442695
        %v801 = vpow.pop %v800
        %v802 = vmul.f32 %v796, 1.442695
        %v803 = vpow.pop %v802
        %v804 = vsub.f32 %v801, 1.0
        %v805 = vsub.f32 %v803, 1.0
        %v806 = vsel %vm798, %v792, %v804
        %v807 = vsel %vm799, %v796, %v805
        %v809 = vsel %vm329, %v806, 0
        %v812 = vsel %vm329, %v807, 0
        %814 = vmatpush.msra.mxu0 0.0
        %815 = vmatpush.msra.mxu0 0.0
        %816 = vmatpush.msra.mxu0 0.0
        %817 = vmatpush.msra.mxu0 0.0
        %818 = vmatpush.msra.mxu0 0.0
        %819 = vmatpush.msra.mxu0 0.0
        %820 = vmatpush.msra.mxu0 0.0
        %821 = vmatpush.msra.mxu0 0.0
        %822 = vmatpush.msra.mxu0 0.0
        %823 = vmatpush.msra.mxu0 0.0
        %824 = vmatpush.msra.mxu0 0.0
        %825 = vmatpush.msra.mxu0 0.0
        %v826 = vand.u32 %v323, 4294901760
        %827 = vmatpush.msra.mxu0 %v826
        %v828 = vand.u32 %v322, 4294901760
        %829 = vmatpush.msra.mxu0 %v828
        %v830 = vand.u32 %v321, 4294901760
        %831 = vmatpush.msra.mxu0 %v830
        %v832 = vand.u32 %v320, 4294901760
        %833 = vmatpush.msra.mxu0 %v832
        %v834 = vand.u32 %v809, 4294901760
        %v835 = vsub.f32 %v809, %v834
        %v836 = vand.u32 %v835, 4294901760
        %v837 = vsub.f32 %v835, %v836
        %v838 = vand.u32 %v837, 4294901760
        %839 = vmatmul.f32.gmra.mxu0 %v838
        %v840 = vpop.f32.mrf.mxu0
        %v841 = vadd.f32 0.0, %v840
        %v842 = vand.u32 %v812, 4294901760
        %v843 = vsub.f32 %v812, %v842
        %v844 = vand.u32 %v843, 4294901760
        %v845 = vsub.f32 %v843, %v844
        %v846 = vand.u32 %v845, 4294901760
        %847 = vmatmul.f32.gmra.mxu0 %v846
        %v848 = vpop.f32.mrf.mxu0
        %v849 = vadd.f32 0.0, %v848
        %850 = vdwg.mxu0
        %851 = vmatpush.msra.mxu0 0.0
        %852 = vmatpush.msra.mxu0 0.0
        %853 = vmatpush.msra.mxu0 0.0
        %854 = vmatpush.msra.mxu0 0.0
        %855 = vmatpush.msra.mxu0 0.0
        %856 = vmatpush.msra.mxu0 0.0
        %857 = vmatpush.msra.mxu0 0.0
        %858 = vmatpush.msra.mxu0 0.0
        %859 = vmatpush.msra.mxu0 0.0
        %860 = vmatpush.msra.mxu0 0.0
        %861 = vmatpush.msra.mxu0 0.0
        %862 = vmatpush.msra.mxu0 0.0
        %v863 = vand.u32 %v323, 4294901760
        %v864 = vsub.f32 %v323, %v863
        %v865 = vand.u32 %v864, 4294901760
        %v866 = vsub.f32 %v864, %v865
        %v867 = vand.u32 %v866, 4294901760
        %868 = vmatpush.msra.mxu0 %v867
        %v869 = vand.u32 %v322, 4294901760
        %v870 = vsub.f32 %v322, %v869
        %v871 = vand.u32 %v870, 4294901760
        %v872 = vsub.f32 %v870, %v871
        %v873 = vand.u32 %v872, 4294901760
        %874 = vmatpush.msra.mxu0 %v873
        %v875 = vand.u32 %v321, 4294901760
        %v876 = vsub.f32 %v321, %v875
        %v877 = vand.u32 %v876, 4294901760
        %v878 = vsub.f32 %v876, %v877
        %v879 = vand.u32 %v878, 4294901760
        %880 = vmatpush.msra.mxu0 %v879
        %v881 = vand.u32 %v320, 4294901760
        %v882 = vsub.f32 %v320, %v881
        %v883 = vand.u32 %v882, 4294901760
        %v884 = vsub.f32 %v882, %v883
        %v885 = vand.u32 %v884, 4294901760
        %886 = vmatpush.msra.mxu0 %v885
        %v887 = vand.u32 %v809, 4294901760
        %888 = vmatmul.f32.gmra.mxu0 %v887
        %v889 = vpop.f32.mrf.mxu0
        %v890 = vadd.f32 %v841, %v889
        %v891 = vand.u32 %v812, 4294901760
        %892 = vmatmul.f32.gmra.mxu0 %v891
        %v893 = vpop.f32.mrf.mxu0
        %v894 = vadd.f32 %v849, %v893
        %895 = vdwg.mxu0
        %896 = vmatpush.msra.mxu0 0.0
        %897 = vmatpush.msra.mxu0 0.0
        %898 = vmatpush.msra.mxu0 0.0
        %899 = vmatpush.msra.mxu0 0.0
        %900 = vmatpush.msra.mxu0 0.0
        %901 = vmatpush.msra.mxu0 0.0
        %902 = vmatpush.msra.mxu0 0.0
        %903 = vmatpush.msra.mxu0 0.0
        %904 = vmatpush.msra.mxu0 0.0
        %905 = vmatpush.msra.mxu0 0.0
        %906 = vmatpush.msra.mxu0 0.0
        %907 = vmatpush.msra.mxu0 0.0
        %v908 = vand.u32 %v323, 4294901760
        %v909 = vsub.f32 %v323, %v908
        %910 = vmatpush.msra.mxu0 %v909
        %v911 = vand.u32 %v322, 4294901760
        %v912 = vsub.f32 %v322, %v911
        %913 = vmatpush.msra.mxu0 %v912
        %v914 = vand.u32 %v321, 4294901760
        %v915 = vsub.f32 %v321, %v914
        %916 = vmatpush.msra.mxu0 %v915
        %v917 = vand.u32 %v320, 4294901760
        %v918 = vsub.f32 %v320, %v917
        %919 = vmatpush.msra.mxu0 %v918
        %v920 = vand.u32 %v809, 4294901760
        %v921 = vsub.f32 %v809, %v920
        %922 = vmatmul.f32.gmra.mxu0 %v921
        %v923 = vpop.f32.mrf.mxu0
        %v924 = vadd.f32 %v890, %v923
        %v925 = vand.u32 %v812, 4294901760
        %v926 = vsub.f32 %v812, %v925
        %927 = vmatmul.f32.gmra.mxu0 %v926
        %v928 = vpop.f32.mrf.mxu0
        %v929 = vadd.f32 %v894, %v928
        %930 = vdwg.mxu0
        %931 = vmatpush.msra.mxu0 0.0
        %932 = vmatpush.msra.mxu0 0.0
        %933 = vmatpush.msra.mxu0 0.0
        %934 = vmatpush.msra.mxu0 0.0
        %935 = vmatpush.msra.mxu0 0.0
        %936 = vmatpush.msra.mxu0 0.0
        %937 = vmatpush.msra.mxu0 0.0
        %938 = vmatpush.msra.mxu0 0.0
        %939 = vmatpush.msra.mxu0 0.0
        %940 = vmatpush.msra.mxu0 0.0
        %941 = vmatpush.msra.mxu0 0.0
        %942 = vmatpush.msra.mxu0 0.0
        %v943 = vand.u32 %v323, 4294901760
        %944 = vmatpush.msra.mxu0 %v943
        %v945 = vand.u32 %v322, 4294901760
        %946 = vmatpush.msra.mxu0 %v945
        %v947 = vand.u32 %v321, 4294901760
        %948 = vmatpush.msra.mxu0 %v947
        %v949 = vand.u32 %v320, 4294901760
        %950 = vmatpush.msra.mxu0 %v949
        %v951 = vand.u32 %v809, 4294901760
        %v952 = vsub.f32 %v809, %v951
        %v953 = vand.u32 %v952, 4294901760
        %954 = vmatmul.f32.gmra.mxu0 %v953
        %v955 = vpop.f32.mrf.mxu0
        %v956 = vadd.f32 %v924, %v955
        %v957 = vand.u32 %v812, 4294901760
        %v958 = vsub.f32 %v812, %v957
        %v959 = vand.u32 %v958, 4294901760
        %960 = vmatmul.f32.gmra.mxu0 %v959
        %v961 = vpop.f32.mrf.mxu0
        %v962 = vadd.f32 %v929, %v961
        %963 = vdwg.mxu0
        %964 = vmatpush.msra.mxu0 0.0
        %965 = vmatpush.msra.mxu0 0.0
        %966 = vmatpush.msra.mxu0 0.0
        %967 = vmatpush.msra.mxu0 0.0
        %968 = vmatpush.msra.mxu0 0.0
        %969 = vmatpush.msra.mxu0 0.0
        %970 = vmatpush.msra.mxu0 0.0
        %971 = vmatpush.msra.mxu0 0.0
        %972 = vmatpush.msra.mxu0 0.0
        %973 = vmatpush.msra.mxu0 0.0
        %974 = vmatpush.msra.mxu0 0.0
        %975 = vmatpush.msra.mxu0 0.0
        %v976 = vand.u32 %v323, 4294901760
        %v977 = vsub.f32 %v323, %v976
        %v978 = vand.u32 %v977, 4294901760
        %979 = vmatpush.msra.mxu0 %v978
        %v980 = vand.u32 %v322, 4294901760
        %v981 = vsub.f32 %v322, %v980
        %v982 = vand.u32 %v981, 4294901760
        %983 = vmatpush.msra.mxu0 %v982
        %v984 = vand.u32 %v321, 4294901760
        %v985 = vsub.f32 %v321, %v984
        %v986 = vand.u32 %v985, 4294901760
        %987 = vmatpush.msra.mxu0 %v986
        %v988 = vand.u32 %v320, 4294901760
        %v989 = vsub.f32 %v320, %v988
        %v990 = vand.u32 %v989, 4294901760
        %991 = vmatpush.msra.mxu0 %v990
        %v992 = vand.u32 %v809, 4294901760
        %993 = vmatmul.f32.gmra.mxu0 %v992
        %v994 = vpop.f32.mrf.mxu0
        %v995 = vadd.f32 %v956, %v994
        %v996 = vand.u32 %v812, 4294901760
        %997 = vmatmul.f32.gmra.mxu0 %v996
        %v998 = vpop.f32.mrf.mxu0
        %v999 = vadd.f32 %v962, %v998
        %1000 = vdwg.mxu0
        %1001 = vmatpush.msra.mxu0 0.0
        %1002 = vmatpush.msra.mxu0 0.0
        %1003 = vmatpush.msra.mxu0 0.0
        %1004 = vmatpush.msra.mxu0 0.0
        %1005 = vmatpush.msra.mxu0 0.0
        %1006 = vmatpush.msra.mxu0 0.0
        %1007 = vmatpush.msra.mxu0 0.0
        %1008 = vmatpush.msra.mxu0 0.0
        %1009 = vmatpush.msra.mxu0 0.0
        %1010 = vmatpush.msra.mxu0 0.0
        %1011 = vmatpush.msra.mxu0 0.0
        %1012 = vmatpush.msra.mxu0 0.0
        %v1013 = vand.u32 %v323, 4294901760
        %1014 = vmatpush.msra.mxu0 %v1013
        %v1015 = vand.u32 %v322, 4294901760
        %1016 = vmatpush.msra.mxu0 %v1015
        %v1017 = vand.u32 %v321, 4294901760
        %1018 = vmatpush.msra.mxu0 %v1017
        %v1019 = vand.u32 %v320, 4294901760
        %1020 = vmatpush.msra.mxu0 %v1019
        %v1021 = vand.u32 %v809, 4294901760
        %1022 = vmatmul.f32.gmra.mxu0 %v1021
        %v1023 = vpop.f32.mrf.mxu0
        %v1024 = vadd.f32 %v995, %v1023
        %v1025 = vand.u32 %v812, 4294901760
        %1026 = vmatmul.f32.gmra.mxu0 %v1025
        %v1027 = vpop.f32.mrf.mxu0
        %v1028 = vadd.f32 %v999, %v1027
        %1029 = vdwg.mxu0
        %v1030 = vperm.slane %v318, 3
        %v1031 = vmul.f32 %v806, %v1030
        %v1032 = vmul.f32 %v807, %v1030
        %v1033 = vsel %vm329, %v1031, 0.0
        %1034 = vadd.xlane.f32.xlu0 %v1033
        %v1035 = vpop.xlane.xlu0 %1034
        %v1036 = vsel %vm329, %v1032, 0.0
        %1037 = vadd.xlane.f32.xlu0 %v1036
        %v1038 = vpop.xlane.xlu0 %1037
        %v1039 = vstv %s325
        %v1040 = vadd.f32 %v1039, %v1035
        %v1041 = vadd.f32 %v1039, %v1038
        %vm1042 = vcmp.gt.f32.partialorder %v1040, 0.0
        %vm1043 = vcmp.gt.f32.partialorder %v1041, 0.0
        %v1044 = vmul.f32 %v1040, 0.2
        %v1045 = vmul.f32 %v1041, 0.2
        %v1046 = vsel %vm1042, %v1040, %v1044
        %v1047 = vsel %vm1043, %v1041, %v1045
        %v1048 = vmax.f32 %v1046, %v1047
        %v1049 = vrot.slane %v1048, 4
        %v1050 = vmax.f32 %v1048, %v1049
        %v1051 = vrot.slane %v1050, 2
        %v1052 = vmax.f32 %v1050, %v1051
        %v1053 = vrot.slane %v1052, 1
        %v1054 = vmax.f32 %v1052, %v1053
        %v1055 = vsub.f32 %v1046, %v1054
        %v1056 = vsub.f32 %v1047, %v1054
        %v1057 = vmul.f32 %v1055, 1.442695
        %v1058 = vpow.pop %v1057
        %v1059 = vmul.f32 %v1056, 1.442695
        %v1060 = vpow.pop %v1059
        %v1063 = vperm.slane %v1058, %v361
        %v1064 = vperm.slane %v1060, %v363
        %v1065 = vsel %vm365, %v1064, %v1063
        %v1066 = vsel %vm367, %v1065, %v1065
        %v1067 = vsel %vm369, %v1065, %v1066
        %v1068 = vsel %vm371, %v1065, %v1067
        %v1069 = vsel %vm373, %v1065, %v1068
        %v1070 = vsel %vm375, %v1065, %v1069
        %v1071 = vsel %vm377, %v1065, %v1070
        %v1073 = vmul.f32 %v285, %v1071
        %v1074 = vsel %vm381, %v1073, 0.0
        %1075 = vadd.xlane.f32.xlu0 %v1074
        %v1076 = vpop.xlane.xlu0 %1075
        %v1077 = vsel %vm390, %v1073, 1.0
        %v1078 = vsel %vm388, %v1076, 16.0
        %v1079 = vrcp.pop %v1078
        %v1080 = vmul.f32 %v1077, %v1079
        %v1082 = vsel %vm381, %v1080, 0
        %1084 = vmatpush.msra.mxu0 0.0
        %1085 = vmatpush.msra.mxu0 0.0
        %1086 = vmatpush.msra.mxu0 0.0
        %1087 = vmatpush.msra.mxu0 0.0
        %1088 = vmatpush.msra.mxu0 0.0
        %1089 = vmatpush.msra.mxu0 0.0
        %1090 = vmatpush.msra.mxu0 0.0
        %1091 = vmatpush.msra.mxu0 0.0
        %1092 = vmatpush.msra.mxu0 0.0
        %1093 = vmatpush.msra.mxu0 0.0
        %1094 = vmatpush.msra.mxu0 0.0
        %1095 = vmatpush.msra.mxu0 0.0
        %1096 = vmatpush.msra.mxu0 0.0
        %1097 = vmatpush.msra.mxu0 0.0
        %v1098 = vand.u32 %v1028, 4294901760
        %1099 = vmatpush.msra.mxu0 %v1098
        %v1100 = vand.u32 %v1024, 4294901760
        %1101 = vmatpush.msra.mxu0 %v1100
        %v1102 = vand.u32 %v1082, 4294901760
        %v1103 = vsub.f32 %v1082, %v1102
        %v1104 = vand.u32 %v1103, 4294901760
        %v1105 = vsub.f32 %v1103, %v1104
        %v1106 = vand.u32 %v1105, 4294901760
        %1107 = vmatmul.f32.gmra.mxu0 %v1106
        %v1108 = vpop.f32.mrf.mxu0
        %v1109 = vadd.f32 0.0, %v1108
        %1110 = vdwg.mxu0
        %1111 = vmatpush.msra.mxu0 0.0
        %1112 = vmatpush.msra.mxu0 0.0
        %1113 = vmatpush.msra.mxu0 0.0
        %1114 = vmatpush.msra.mxu0 0.0
        %1115 = vmatpush.msra.mxu0 0.0
        %1116 = vmatpush.msra.mxu0 0.0
        %1117 = vmatpush.msra.mxu0 0.0
        %1118 = vmatpush.msra.mxu0 0.0
        %1119 = vmatpush.msra.mxu0 0.0
        %1120 = vmatpush.msra.mxu0 0.0
        %1121 = vmatpush.msra.mxu0 0.0
        %1122 = vmatpush.msra.mxu0 0.0
        %1123 = vmatpush.msra.mxu0 0.0
        %1124 = vmatpush.msra.mxu0 0.0
        %v1125 = vand.u32 %v1028, 4294901760
        %v1126 = vsub.f32 %v1028, %v1125
        %v1127 = vand.u32 %v1126, 4294901760
        %v1128 = vsub.f32 %v1126, %v1127
        %v1129 = vand.u32 %v1128, 4294901760
        %1130 = vmatpush.msra.mxu0 %v1129
        %v1131 = vand.u32 %v1024, 4294901760
        %v1132 = vsub.f32 %v1024, %v1131
        %v1133 = vand.u32 %v1132, 4294901760
        %v1134 = vsub.f32 %v1132, %v1133
        %v1135 = vand.u32 %v1134, 4294901760
        %1136 = vmatpush.msra.mxu0 %v1135
        %v1137 = vand.u32 %v1082, 4294901760
        %1138 = vmatmul.f32.gmra.mxu0 %v1137
        %v1139 = vpop.f32.mrf.mxu0
        %v1140 = vadd.f32 %v1109, %v1139
        %1141 = vdwg.mxu0
        %1142 = vmatpush.msra.mxu0 0.0
        %1143 = vmatpush.msra.mxu0 0.0
        %1144 = vmatpush.msra.mxu0 0.0
        %1145 = vmatpush.msra.mxu0 0.0
        %1146 = vmatpush.msra.mxu0 0.0
        %1147 = vmatpush.msra.mxu0 0.0
        %1148 = vmatpush.msra.mxu0 0.0
        %1149 = vmatpush.msra.mxu0 0.0
        %1150 = vmatpush.msra.mxu0 0.0
        %1151 = vmatpush.msra.mxu0 0.0
        %1152 = vmatpush.msra.mxu0 0.0
        %1153 = vmatpush.msra.mxu0 0.0
        %1154 = vmatpush.msra.mxu0 0.0
        %1155 = vmatpush.msra.mxu0 0.0
        %v1156 = vand.u32 %v1028, 4294901760
        %v1157 = vsub.f32 %v1028, %v1156
        %1158 = vmatpush.msra.mxu0 %v1157
        %v1159 = vand.u32 %v1024, 4294901760
        %v1160 = vsub.f32 %v1024, %v1159
        %1161 = vmatpush.msra.mxu0 %v1160
        %v1162 = vand.u32 %v1082, 4294901760
        %v1163 = vsub.f32 %v1082, %v1162
        %1164 = vmatmul.f32.gmra.mxu0 %v1163
        %v1165 = vpop.f32.mrf.mxu0
        %v1166 = vadd.f32 %v1140, %v1165
        %1167 = vdwg.mxu0
        %1168 = vmatpush.msra.mxu0 0.0
        %1169 = vmatpush.msra.mxu0 0.0
        %1170 = vmatpush.msra.mxu0 0.0
        %1171 = vmatpush.msra.mxu0 0.0
        %1172 = vmatpush.msra.mxu0 0.0
        %1173 = vmatpush.msra.mxu0 0.0
        %1174 = vmatpush.msra.mxu0 0.0
        %1175 = vmatpush.msra.mxu0 0.0
        %1176 = vmatpush.msra.mxu0 0.0
        %1177 = vmatpush.msra.mxu0 0.0
        %1178 = vmatpush.msra.mxu0 0.0
        %1179 = vmatpush.msra.mxu0 0.0
        %1180 = vmatpush.msra.mxu0 0.0
        %1181 = vmatpush.msra.mxu0 0.0
        %v1182 = vand.u32 %v1028, 4294901760
        %1183 = vmatpush.msra.mxu0 %v1182
        %v1184 = vand.u32 %v1024, 4294901760
        %1185 = vmatpush.msra.mxu0 %v1184
        %v1186 = vand.u32 %v1082, 4294901760
        %v1187 = vsub.f32 %v1082, %v1186
        %v1188 = vand.u32 %v1187, 4294901760
        %1189 = vmatmul.f32.gmra.mxu0 %v1188
        %v1190 = vpop.f32.mrf.mxu0
        %v1191 = vadd.f32 %v1166, %v1190
        %1192 = vdwg.mxu0
        %1193 = vmatpush.msra.mxu0 0.0
        %1194 = vmatpush.msra.mxu0 0.0
        %1195 = vmatpush.msra.mxu0 0.0
        %1196 = vmatpush.msra.mxu0 0.0
        %1197 = vmatpush.msra.mxu0 0.0
        %1198 = vmatpush.msra.mxu0 0.0
        %1199 = vmatpush.msra.mxu0 0.0
        %1200 = vmatpush.msra.mxu0 0.0
        %1201 = vmatpush.msra.mxu0 0.0
        %1202 = vmatpush.msra.mxu0 0.0
        %1203 = vmatpush.msra.mxu0 0.0
        %1204 = vmatpush.msra.mxu0 0.0
        %1205 = vmatpush.msra.mxu0 0.0
        %1206 = vmatpush.msra.mxu0 0.0
        %v1207 = vand.u32 %v1028, 4294901760
        %v1208 = vsub.f32 %v1028, %v1207
        %v1209 = vand.u32 %v1208, 4294901760
        %1210 = vmatpush.msra.mxu0 %v1209
        %v1211 = vand.u32 %v1024, 4294901760
        %v1212 = vsub.f32 %v1024, %v1211
        %v1213 = vand.u32 %v1212, 4294901760
        %1214 = vmatpush.msra.mxu0 %v1213
        %v1215 = vand.u32 %v1082, 4294901760
        %1216 = vmatmul.f32.gmra.mxu0 %v1215
        %v1217 = vpop.f32.mrf.mxu0
        %v1218 = vadd.f32 %v1191, %v1217
        %1219 = vdwg.mxu0
        %1220 = vmatpush.msra.mxu0 0.0
        %1221 = vmatpush.msra.mxu0 0.0
        %1222 = vmatpush.msra.mxu0 0.0
        %1223 = vmatpush.msra.mxu0 0.0
        %1224 = vmatpush.msra.mxu0 0.0
        %1225 = vmatpush.msra.mxu0 0.0
        %1226 = vmatpush.msra.mxu0 0.0
        %1227 = vmatpush.msra.mxu0 0.0
        %1228 = vmatpush.msra.mxu0 0.0
        %1229 = vmatpush.msra.mxu0 0.0
        %1230 = vmatpush.msra.mxu0 0.0
        %1231 = vmatpush.msra.mxu0 0.0
        %1232 = vmatpush.msra.mxu0 0.0
        %1233 = vmatpush.msra.mxu0 0.0
        %v1234 = vand.u32 %v1028, 4294901760
        %1235 = vmatpush.msra.mxu0 %v1234
        %v1236 = vand.u32 %v1024, 4294901760
        %1237 = vmatpush.msra.mxu0 %v1236
        %v1238 = vand.u32 %v1082, 4294901760
        %1239 = vmatmul.f32.gmra.mxu0 %v1238
        %v1240 = vpop.f32.mrf.mxu0
        %v1241 = vadd.f32 %v1218, %v1240
        %1242 = vdwg.mxu0
        %v1243 = vperm.slane %v318, 4
        %v1244 = vmul.f32 %v806, %v1243
        %v1245 = vmul.f32 %v807, %v1243
        %v1246 = vsel %vm329, %v1244, 0.0
        %1247 = vadd.xlane.f32.xlu0 %v1246
        %v1248 = vpop.xlane.xlu0 %1247
        %v1249 = vsel %vm329, %v1245, 0.0
        %1250 = vadd.xlane.f32.xlu0 %v1249
        %v1251 = vpop.xlane.xlu0 %1250
        %v1253 = vperm.slane %v319, 0
        %v1255 = vmul.f32 %v1241, %v1253
        %v1256 = vsel %vm381, %v1255, 0.0
        %1257 = vadd.xlane.f32.xlu0 %v1256
        %v1258 = vpop.xlane.xlu0 %1257
        %v1260 = vperm.slane %v1258, %v361
        %v1261 = vsel %vm367, %v1260, %v1260
        %v1262 = vsel %vm369, %v1260, %v1261
        %v1263 = vsel %vm371, %v1260, %v1262
        %v1264 = vsel %vm373, %v1260, %v1263
        %v1265 = vsel %vm375, %v1260, %v1264
        %v1266 = vsel %vm377, %v1260, %v1265
        %v1268 = vadd.f32 %v1248, %v1266
        %v1269 = vadd.f32 %v1251, %v1266
        %vm1270 = vcmp.gt.f32.partialorder %v1268, 0.0
        %vm1271 = vcmp.gt.f32.partialorder %v1269, 0.0
        %v1272 = vmul.f32 %v1268, 0.2
        %v1273 = vmul.f32 %v1269, 0.2
        %v1274 = vsel %vm1270, %v1268, %v1272
        %v1275 = vsel %vm1271, %v1269, %v1273
        %v1276 = vsel %vm588, %v1274, -9e+15
        %v1277 = vsel %vm589, %v1275, -9e+15
        %v1278 = vsel %vm592, %v1276, -inf
        %1279 = vmax.xlane.f32.xlu0 %v1278
        %v1280 = vpop.xlane.xlu0 %1279
        %v1281 = vsel %vm592, %v1277, -inf
        %1282 = vmax.xlane.f32.xlu0 %v1281
        %v1283 = vpop.xlane.xlu0 %1282
        %v1284 = vsub.f32 %v1276, %v1280
        %v1285 = vsub.f32 %v1277, %v1283
        %v1286 = vmul.f32 %v1284, 1.442695
        %v1287 = vpow.pop %v1286
        %v1288 = vmul.f32 %v1285, 1.442695
        %v1289 = vpow.pop %v1288
        %v1290 = vsel %vm592, %v1287, 0.0
        %1291 = vadd.xlane.f32.xlu0 %v1290
        %v1292 = vpop.xlane.xlu0 %1291
        %v1293 = vsel %vm592, %v1289, 0.0
        %1294 = vadd.xlane.f32.xlu0 %v1293
        %v1295 = vpop.xlane.xlu0 %1294
        %v1296 = vrcp.pop %v1292
        %v1297 = vrcp.pop %v1295
        %v1298 = vmul.f32 %v1287, %v1296
        %v1299 = vmul.f32 %v1289, %v1297
        %v1301 = vsel %vm592, %v1298, 0
        %v1304 = vsel %vm592, %v1299, 0
        %1306 = vmatpush.msra.mxu0 0.0
        %1307 = vmatpush.msra.mxu0 0.0
        %1308 = vmatpush.msra.mxu0 0.0
        %1309 = vmatpush.msra.mxu0 0.0
        %1310 = vmatpush.msra.mxu0 0.0
        %1311 = vmatpush.msra.mxu0 0.0
        %1312 = vmatpush.msra.mxu0 0.0
        %1313 = vmatpush.msra.mxu0 0.0
        %1314 = vmatpush.msra.mxu0 0.0
        %1315 = vmatpush.msra.mxu0 0.0
        %1316 = vmatpush.msra.mxu0 0.0
        %1317 = vmatpush.msra.mxu0 0.0
        %1318 = vmatpush.msra.mxu0 0.0
        %1319 = vmatpush.msra.mxu0 0.0
        %1320 = vmatpush.msra.mxu0 0.0
        %v1321 = vand.u32 %v1241, 4294901760
        %1322 = vmatpush.msra.mxu0 %v1321
        %v1323 = vand.u32 %v1301, 4294901760
        %v1324 = vsub.f32 %v1301, %v1323
        %v1325 = vand.u32 %v1324, 4294901760
        %v1326 = vsub.f32 %v1324, %v1325
        %v1327 = vand.u32 %v1326, 4294901760
        %1328 = vmatmul.f32.gmra.mxu0 %v1327
        %v1329 = vpop.f32.mrf.mxu0
        %v1330 = vadd.f32 0.0, %v1329
        %v1331 = vand.u32 %v1304, 4294901760
        %v1332 = vsub.f32 %v1304, %v1331
        %v1333 = vand.u32 %v1332, 4294901760
        %v1334 = vsub.f32 %v1332, %v1333
        %v1335 = vand.u32 %v1334, 4294901760
        %1336 = vmatmul.f32.gmra.mxu0 %v1335
        %v1337 = vpop.f32.mrf.mxu0
        %v1338 = vadd.f32 0.0, %v1337
        %1339 = vdwg.mxu0
        %1340 = vmatpush.msra.mxu0 0.0
        %1341 = vmatpush.msra.mxu0 0.0
        %1342 = vmatpush.msra.mxu0 0.0
        %1343 = vmatpush.msra.mxu0 0.0
        %1344 = vmatpush.msra.mxu0 0.0
        %1345 = vmatpush.msra.mxu0 0.0
        %1346 = vmatpush.msra.mxu0 0.0
        %1347 = vmatpush.msra.mxu0 0.0
        %1348 = vmatpush.msra.mxu0 0.0
        %1349 = vmatpush.msra.mxu0 0.0
        %1350 = vmatpush.msra.mxu0 0.0
        %1351 = vmatpush.msra.mxu0 0.0
        %1352 = vmatpush.msra.mxu0 0.0
        %1353 = vmatpush.msra.mxu0 0.0
        %1354 = vmatpush.msra.mxu0 0.0
        %v1355 = vand.u32 %v1241, 4294901760
        %v1356 = vsub.f32 %v1241, %v1355
        %v1357 = vand.u32 %v1356, 4294901760
        %v1358 = vsub.f32 %v1356, %v1357
        %v1359 = vand.u32 %v1358, 4294901760
        %1360 = vmatpush.msra.mxu0 %v1359
        %v1361 = vand.u32 %v1301, 4294901760
        %1362 = vmatmul.f32.gmra.mxu0 %v1361
        %v1363 = vpop.f32.mrf.mxu0
        %v1364 = vadd.f32 %v1330, %v1363
        %v1365 = vand.u32 %v1304, 4294901760
        %1366 = vmatmul.f32.gmra.mxu0 %v1365
        %v1367 = vpop.f32.mrf.mxu0
        %v1368 = vadd.f32 %v1338, %v1367
        %1369 = vdwg.mxu0
        %1370 = vmatpush.msra.mxu0 0.0
        %1371 = vmatpush.msra.mxu0 0.0
        %1372 = vmatpush.msra.mxu0 0.0
        %1373 = vmatpush.msra.mxu0 0.0
        %1374 = vmatpush.msra.mxu0 0.0
        %1375 = vmatpush.msra.mxu0 0.0
        %1376 = vmatpush.msra.mxu0 0.0
        %1377 = vmatpush.msra.mxu0 0.0
        %1378 = vmatpush.msra.mxu0 0.0
        %1379 = vmatpush.msra.mxu0 0.0
        %1380 = vmatpush.msra.mxu0 0.0
        %1381 = vmatpush.msra.mxu0 0.0
        %1382 = vmatpush.msra.mxu0 0.0
        %1383 = vmatpush.msra.mxu0 0.0
        %1384 = vmatpush.msra.mxu0 0.0
        %v1385 = vand.u32 %v1241, 4294901760
        %v1386 = vsub.f32 %v1241, %v1385
        %1387 = vmatpush.msra.mxu0 %v1386
        %v1388 = vand.u32 %v1301, 4294901760
        %v1389 = vsub.f32 %v1301, %v1388
        %1390 = vmatmul.f32.gmra.mxu0 %v1389
        %v1391 = vpop.f32.mrf.mxu0
        %v1392 = vadd.f32 %v1364, %v1391
        %v1393 = vand.u32 %v1304, 4294901760
        %v1394 = vsub.f32 %v1304, %v1393
        %1395 = vmatmul.f32.gmra.mxu0 %v1394
        %v1396 = vpop.f32.mrf.mxu0
        %v1397 = vadd.f32 %v1368, %v1396
        %1398 = vdwg.mxu0
        %1399 = vmatpush.msra.mxu0 0.0
        %1400 = vmatpush.msra.mxu0 0.0
        %1401 = vmatpush.msra.mxu0 0.0
        %1402 = vmatpush.msra.mxu0 0.0
        %1403 = vmatpush.msra.mxu0 0.0
        %1404 = vmatpush.msra.mxu0 0.0
        %1405 = vmatpush.msra.mxu0 0.0
        %1406 = vmatpush.msra.mxu0 0.0
        %1407 = vmatpush.msra.mxu0 0.0
        %1408 = vmatpush.msra.mxu0 0.0
        %1409 = vmatpush.msra.mxu0 0.0
        %1410 = vmatpush.msra.mxu0 0.0
        %1411 = vmatpush.msra.mxu0 0.0
        %1412 = vmatpush.msra.mxu0 0.0
        %1413 = vmatpush.msra.mxu0 0.0
        %v1414 = vand.u32 %v1241, 4294901760
        %1415 = vmatpush.msra.mxu0 %v1414
        %v1416 = vand.u32 %v1301, 4294901760
        %v1417 = vsub.f32 %v1301, %v1416
        %v1418 = vand.u32 %v1417, 4294901760
        %1419 = vmatmul.f32.gmra.mxu0 %v1418
        %v1420 = vpop.f32.mrf.mxu0
        %v1421 = vadd.f32 %v1392, %v1420
        %v1422 = vand.u32 %v1304, 4294901760
        %v1423 = vsub.f32 %v1304, %v1422
        %v1424 = vand.u32 %v1423, 4294901760
        %1425 = vmatmul.f32.gmra.mxu0 %v1424
        %v1426 = vpop.f32.mrf.mxu0
        %v1427 = vadd.f32 %v1397, %v1426
        %1428 = vdwg.mxu0
        %1429 = vmatpush.msra.mxu0 0.0
        %1430 = vmatpush.msra.mxu0 0.0
        %1431 = vmatpush.msra.mxu0 0.0
        %1432 = vmatpush.msra.mxu0 0.0
        %1433 = vmatpush.msra.mxu0 0.0
        %1434 = vmatpush.msra.mxu0 0.0
        %1435 = vmatpush.msra.mxu0 0.0
        %1436 = vmatpush.msra.mxu0 0.0
        %1437 = vmatpush.msra.mxu0 0.0
        %1438 = vmatpush.msra.mxu0 0.0
        %1439 = vmatpush.msra.mxu0 0.0
        %1440 = vmatpush.msra.mxu0 0.0
        %1441 = vmatpush.msra.mxu0 0.0
        %1442 = vmatpush.msra.mxu0 0.0
        %1443 = vmatpush.msra.mxu0 0.0
        %v1444 = vand.u32 %v1241, 4294901760
        %v1445 = vsub.f32 %v1241, %v1444
        %v1446 = vand.u32 %v1445, 4294901760
        %1447 = vmatpush.msra.mxu0 %v1446
        %v1448 = vand.u32 %v1301, 4294901760
        %1449 = vmatmul.f32.gmra.mxu0 %v1448
        %v1450 = vpop.f32.mrf.mxu0
        %v1451 = vadd.f32 %v1421, %v1450
        %v1452 = vand.u32 %v1304, 4294901760
        %1453 = vmatmul.f32.gmra.mxu0 %v1452
        %v1454 = vpop.f32.mrf.mxu0
        %v1455 = vadd.f32 %v1427, %v1454
        %1456 = vdwg.mxu0
        %1457 = vmatpush.msra.mxu0 0.0
        %1458 = vmatpush.msra.mxu0 0.0
        %1459 = vmatpush.msra.mxu0 0.0
        %1460 = vmatpush.msra.mxu0 0.0
        %1461 = vmatpush.msra.mxu0 0.0
        %1462 = vmatpush.msra.mxu0 0.0
        %1463 = vmatpush.msra.mxu0 0.0
        %1464 = vmatpush.msra.mxu0 0.0
        %1465 = vmatpush.msra.mxu0 0.0
        %1466 = vmatpush.msra.mxu0 0.0
        %1467 = vmatpush.msra.mxu0 0.0
        %1468 = vmatpush.msra.mxu0 0.0
        %1469 = vmatpush.msra.mxu0 0.0
        %1470 = vmatpush.msra.mxu0 0.0
        %1471 = vmatpush.msra.mxu0 0.0
        %v1472 = vand.u32 %v1241, 4294901760
        %1473 = vmatpush.msra.mxu0 %v1472
        %v1474 = vand.u32 %v1301, 4294901760
        %1475 = vmatmul.f32.gmra.mxu0 %v1474
        %v1476 = vpop.f32.mrf.mxu0
        %v1477 = vadd.f32 %v1451, %v1476
        %v1478 = vand.u32 %v1304, 4294901760
        %1479 = vmatmul.f32.gmra.mxu0 %v1478
        %v1480 = vpop.f32.mrf.mxu0
        %v1481 = vadd.f32 %v1455, %v1480
        %1482 = vdwg.mxu0
        %1483 = vst.msk [vmem:[%s271] sm:$0xff] %vm381, %v1477
        %1484 = vst.msk [vmem:[%s271 + $0x8] sm:$0xff] %vm381, %v1481
        %s1485 = sand.u32 %s165, 1
        %s1486 = scalar_lea.sflag [#allocation3], %s1485
        %s1487 = sand.u32 %s165, 1
        %s1488 = smul.addr %s1487, 16
        %s1489 = scalar_lea.vmem [#allocation5], %s1488
        // Predicated region
        $region49: #{tpu_custom_call.1} parent=43 // pred_check
          %p1490 = pneg %p175
        $region50: #{tpu_custom_call.1} parent=43 // pred_check_branch
          %1492 = sbr.rel (%p1490) target = $region52
        $region51: #{tpu_custom_call.1} parent=43 // pred_region
          %1494 = vsyncadd %s1486, 0
          %s1495 = smul.addr %s21, 2
          %s1496 = smul.addr %s1495, 8
          %s1497 = scalar_lea.hbm %s6, %s1496
          %s1498 = sshll.u32 %s1489, 4
          %s1499 = int_to_ptr.vmem [resolvable:$true] %s1498
          %s1500 = sshll.u32 %s1497, 4
          %s1501 = int_to_ptr.hbm [resolvable:$true] %s1500
          %1506 = dma.vmem_to_hbm [thread:$0]  %s1499, 256, %s1501, %s1486, 128, 128, 8
        $region52: #{tpu_custom_call.1} parent=43 // pred_fallthru
          _
      $region44: #{tpu_custom_call.1} parent=5 // pred_fallthru
        _
      %p1507 = scmp.le.s32.totalorder 2, %s16
      // Predicated region
      $region53: #{tpu_custom_call.1} parent=5 // pred_check
        %p1508 = pneg %p1507
      $region54: #{tpu_custom_call.1} parent=5 // pred_check_branch
        %1510 = sbr.rel (%p1508) target = $region56
      $region55: #{tpu_custom_call.1} parent=5 // pred_region
        %s1511 = ssub.s32 %s16, 2
        // Predicated region
        $region57: #{tpu_custom_call.1} parent=55 // pred_check
          %p1512 = pneg %p181
        $region58: #{tpu_custom_call.1} parent=55 // pred_check_branch
          %1514 = sbr.rel (%p1512) target = $region60
        $region59: #{tpu_custom_call.1} parent=55 // pred_region
          %s1515 = sand.u32 %s166, 1
          %s1516 = scalar_lea.sflag [#allocation3], %s1515
          %s1517 = sand.u32 %s166, 1
          %s1518 = smul.addr %s1517, 16
          %s1519 = scalar_lea.vmem [#allocation5], %s1518
          %1521 = dma.done %s1516, 256
        $region60: #{tpu_custom_call.1} parent=55 // pred_fallthru
          _
      $region56: #{tpu_custom_call.1} parent=5 // pred_fallthru
        _
    $region6: #{tpu_custom_call.1} parent=1 // loop_footer
      %s20 = sadd.s32 1, %s16
    $region7: #{tpu_custom_call.1} parent=1 // loop_footer_branch
      %15 = sbr.rel target = $region3
    $region8: #{tpu_custom_call.1} parent=1 // loop_exit
      _
    %1522 = vsyncpa [#allocation3], 1
    %s1523 = scalar_lea.sflag [#allocation3], 1
    %1524 = vsyncpa %s1523, 1
    %1525 = vsyncpa [#allocation4], 1
    %s1526 = scalar_lea.sflag [#allocation4], 1
    %1527 = vsyncpa %s1526, 1

</llo_original>
